<compile_context>
chip_gen: v7x
topology: tpu7x:2x2x1
jax: 0.10.0
libtpu: 0.0.40
codegen_flags: <defaults>
</compile_context>

<pallas_src>
import functools

import jax
import jax.numpy as jnp
from jax.experimental import pallas as pl
from jax.experimental.pallas import tpu as pltpu

EMBED_DIM = 64
NUM_HEADS = 2
HEAD_DIM = EMBED_DIM // NUM_HEADS
SCALE = HEAD_DIM ** (-0.5)

_LANE_DENSE_OK = None  # cached result of the lane-dense-layout probe


def _mha_kernel(x_ref, wqkv_ref, bqkv_ref, wo_ref, bo_ref, *out_refs,
                return_weights, lane_dense):
    if return_weights:
        out_ref, attnw_ref = out_refs
    else:
        (out_ref,) = out_refs

    bb, S, E = x_ref.shape
    R = bb * S

    # Fused Q/K/V projection over all bb*S rows in one MXU matmul.
    # (The softmax scale is folded into the Q columns/bias in the wrapper.)
    x2 = x_ref[...].reshape(R, E).astype(wqkv_ref.dtype)
    qkv = jnp.dot(x2, wqkv_ref[...], preferred_element_type=jnp.float32)
    qkv = (qkv + bqkv_ref[0]).reshape(bb, S, 3 * E)

    wo = wo_ref[...]
    out_acc = None
    for h in range(NUM_HEADS):  # static unroll, NUM_HEADS = 2
        q_h = qkv[:, :, h * HEAD_DIM:(h + 1) * HEAD_DIM]                   # (bb,S,D) pre-scaled
        k_h = qkv[:, :, E + h * HEAD_DIM:E + (h + 1) * HEAD_DIM]           # (bb,S,D)
        v_h = qkv[:, :, 2 * E + h * HEAD_DIM:2 * E + (h + 1) * HEAD_DIM]   # (bb,S,D)

        # scores = q k^T (batched over the batch block, no explicit transpose)
        scores = jnp.einsum('bqd,bkd->bqk', q_h, k_h,
                            preferred_element_type=jnp.float32)            # (bb,S,S)

        # softmax in float32 (matches torch softmax dtype=float32)
        m = jnp.max(scores, axis=-1, keepdims=True)
        e = jnp.exp(scores - m)
        denom = jnp.sum(e, axis=-1, keepdims=True)
        inv = pl.reciprocal(denom, approx=True)      # EUP slot (nearly free)
        inv = inv * (2.0 - denom * inv)              # one Newton step -> ~f32 accuracy
        p = e * inv                                  # (bb,S,S) f32

        if return_weights:
            if lane_dense:
                attnw_ref[:, h] = p.reshape(bb, S * S)   # contiguous per-head slab
            else:
                attnw_ref[:, h] = p

        # Per-head context, immediately projected by the matching W_out rows and
        # accumulated in registers (no ctx scratch, no concatenate).
        ctx_h = jnp.einsum('bqk,bkd->bqd', p, v_h,
                           preferred_element_type=jnp.float32)              # (bb,S,D)
        contrib = jnp.dot(ctx_h.reshape(R, HEAD_DIM).astype(wo.dtype),
                          wo[h * HEAD_DIM:(h + 1) * HEAD_DIM, :],
                          preferred_element_type=jnp.float32)               # (R,E)
        out_acc = contrib if out_acc is None else out_acc + contrib

    out = out_acc + bo_ref[0]
    if lane_dense:
        out_ref[...] = out.reshape(bb, S * E).astype(out_ref.dtype)
    else:
        out_ref[...] = out.reshape(bb, S, E).astype(out_ref.dtype)


def _has_two_tensorcores():
    """Only v7x (and megacore v4/v5p) have >1 TensorCore per device."""
    try:
        kind = jax.devices()[0].device_kind.lower()
    except Exception:
        return False
    return any(t in kind for t in ("v7", "7x", "v4", "v5p"))


def _pick_batch_block(B, S, E, num_heads, return_weights, two_cores):
    """Batch elements per grid step.

    Single-TC chips (v5e/v6e): the grid is a serial loop, so take the largest
    block that fits the VMEM budget (fewer, fatter steps amortize the ~0.35 us
    per-step overhead).  2-TC chips (v7x): only split into >=2 steps when every
    step still carries >= 128 rows.
    """
    # Double-buffered f32 bytes per batch element per step (x + out + attnw blocks).
    bytes_per_b = 4 * (2 * S * E + 2 * S * E)
    if return_weights:
        bytes_per_b += 4 * 2 * num_heads * S * S
    budget = 24 << 20  # stay well under v7x's 32 MiB scoped default / 64 MiB physical
    bb = max(1, min(B, budget // max(bytes_per_b, 1)))
    if two_cores and B >= 2 and (B // 2) * S >= 128:
        bb = min(bb, B // 2)
    bb = max(1, min(bb, B))
    while B % bb:
        bb -= 1
    return bb


def multi_head_attention(x, params, *, batch_block=None, return_weights=True,
                         compute_dtype=jnp.float32, lane_dense=None):
    """x: (B, S, E) float32.  Returns (attn_output (B,S,E), attn_weights (B,H,S,S))."""
    global _LANE_DENSE_OK
    B, S, E = x.shape
    assert E == EMBED_DIM
    H = NUM_HEADS

    wq, bq, wk, bk, wv, bv, wo, bo = params

    # Fused QKV operand (1 matmul instead of 3); fold the softmax scale into the
    # Q columns/bias so the kernel needs no (S,S) VPU multiply.
    wqkv = jnp.concatenate([wq * SCALE, wk, wv], axis=1).astype(compute_dtype)   # (E,3E)
    bqkv = jnp.concatenate([bq * SCALE, bk, bv]).reshape(1, 3 * E).astype(jnp.float32)
    wo2 = wo.astype(compute_dtype)                                               # (E,E)
    bo2 = bo.reshape(1, E).astype(jnp.float32)

    two_cores = _has_two_tensorcores()
    if batch_block is None:
        batch_block = _pick_batch_block(B, S, E, H, return_weights, two_cores)
    assert B % batch_block == 0
    bb = batch_block
    n_steps = B // bb

    # Explicit VMEM budget for the double-buffered blocks + resident weights.
    bytes_per_b = 4 * (4 * S * E + (2 * H * S * S if return_weights else 0))
    weight_bytes = 4 * (E * 3 * E + 3 * E + E * E + E)
    vmem_limit = int(min(48 << 20, max(32 << 20, 2 * (bb * bytes_per_b + weight_bytes))))

    def _build_and_run(dense):
        kern = functools.partial(_mha_kernel, return_weights=return_weights,
                                 lane_dense=dense)
        in_specs = [
            pl.BlockSpec((bb, S, E), lambda i: (i, 0, 0)),   # x block
            pl.BlockSpec((E, 3 * E), lambda i: (0, 0)),      # fused W_qkv (DMA'd once)
            pl.BlockSpec((1, 3 * E), lambda i: (0, 0)),      # fused b_qkv
            pl.BlockSpec((E, E), lambda i: (0, 0)),          # W_out
            pl.BlockSpec((1, E), lambda i: (0, 0)),          # b_out
        ]
        if dense:   # lane-dense outputs (row-major identical to the 3D/4D layout)
            out_shapes = [jax.ShapeDtypeStruct((B, S * E), x.dtype)]
            out_specs = [pl.BlockSpec((bb, S * E), lambda i: (i, 0))]
        else:
            out_shapes = [jax.ShapeDtypeStruct((B, S, E), x.dtype)]
            out_specs = [pl.BlockSpec((bb, S, E), lambda i: (i, 0, 0))]
        if return_weights:
            if dense:
                out_shapes.append(jax.ShapeDtypeStruct((B, H, S * S), jnp.float32))
                out_specs.append(pl.BlockSpec((bb, H, S * S), lambda i: (i, 0, 0)))
            else:
                out_shapes.append(jax.ShapeDtypeStruct((B, H, S, S), jnp.float32))
                out_specs.append(pl.BlockSpec((bb, H, S, S), lambda i: (i, 0, 0, 0)))

        outs = pl.pallas_call(
            kern,
            out_shape=tuple(out_shapes),
            grid_spec=pltpu.PrefetchScalarGridSpec(
                num_scalar_prefetch=0,
                grid=(n_steps,),
                in_specs=in_specs,
                out_specs=tuple(out_specs),
            ),
            compiler_params=pltpu.CompilerParams(
                dimension_semantics=("parallel",),
                vmem_limit_bytes=vmem_limit),
        )(x, wqkv, bqkv, wo2, bo2)

        out = outs[0].reshape(B, S, E) if dense else outs[0]
        if not return_weights:
            return out
        w = outs[1].reshape(B, H, S, S) if dense else outs[1]
        return out, w

    if lane_dense is None:
        lane_dense = True if _LANE_DENSE_OK is None else _LANE_DENSE_OK
    if not lane_dense:
        return _build_and_run(False)
    try:
        res = _build_and_run(True)
        jax.block_until_ready(res)   # surface any Mosaic lowering failure here
        _LANE_DENSE_OK = True
        return res
    except Exception:
        # TODO(synk): some Mosaic versions reject the lane-merging value reshape;
        # fall back to the (B,S,E)/(B,H,S,S) store layout (still scratch-free).
        _LANE_DENSE_OK = False
        return _build_and_run(False)


def init_params(key, embed_dim=EMBED_DIM):
    """Deterministic synthetic parameters (shapes follow nn.Linear(E, E))."""
    ks = jax.random.split(key, 8)
    scale = 1.0 / jnp.sqrt(embed_dim)

    def lin(kw, kb):
        # stored transposed as W_t (in, out) so y = x @ W_t + b == x @ W.T + b
        w = jax.random.uniform(kw, (embed_dim, embed_dim), jnp.float32, -scale, scale)
        b = jax.random.uniform(kb, (embed_dim,), jnp.float32, -scale, scale)
        return w, b

    wq, bq = lin(ks[0], ks[1])
    wk, bk = lin(ks[2], ks[3])
    wv, bv = lin(ks[4], ks[5])
    wo, bo = lin(ks[6], ks[7])
    return (wq, bq, wk, bk, wv, bv, wo, bo)


def _reference(x, params):
    """Pure-JAX reference replicating the PyTorch forward (eval mode)."""
    wq, bq, wk, bk, wv, bv, wo, bo = params
    B, S, E = x.shape
    q = x @ wq + bq
    k = x @ wk + bk
    v = x @ wv + bv

    def split(t):
        return t.reshape(B, S, NUM_HEADS, HEAD_DIM).transpose(0, 2, 1, 3)

    qh, kh, vh = split(q), split(k), split(v)
    aw = jnp.einsum('bhqd,bhkd->bhqk', qh, kh) * SCALE
    aw = jax.nn.softmax(aw.astype(jnp.float32), axis=-1)
    ctx = jnp.einsum('bhqk,bhkd->bhqd', aw.astype(x.dtype), vh)
    ctx = ctx.transpose(0, 2, 1, 3).reshape(B, S, E)
    out = ctx @ wo + bo
    return out, aw


if __name__ == "__main__":
    key = jax.random.PRNGKey(0)
    kx, kp = jax.random.split(key)

    B, S, E = 2, 8, EMBED_DIM
    x = jax.random.normal(kx, (B, S, E), dtype=jnp.float32)
    params = init_params(kp)

    attn_out, attn_w = multi_head_attention(x, params)
    attn_out = jax.block_until_ready(attn_out)
    attn_w = jax.block_until_ready(attn_w)

    ref_out, ref_w = _reference(x, params)
    assert attn_out.shape == (B, S, E)
    assert attn_w.shape == (B, NUM_HEADS, S, S)
    assert jnp.allclose(attn_out, ref_out, atol=1e-4, rtol=1e-4)
    assert jnp.allclose(attn_w, ref_w, atol=1e-4, rtol=1e-4)

    print("KERNEL_OK")
</pallas_src>

<mosaic_0001>
module attributes {stable_mosaic.version = 11 : i64} {
  func.func @_mha_kernel(%arg0: i32, %arg1: memref<2x8x64xf32, #tpu.memory_space<vmem>>, %arg2: memref<64x192xf32, #tpu.memory_space<vmem>>, %arg3: memref<1x192xf32, #tpu.memory_space<vmem>>, %arg4: memref<64x64xf32, #tpu.memory_space<vmem>>, %arg5: memref<1x64xf32, #tpu.memory_space<vmem>>, %arg6: memref<2x512xf32, #tpu.memory_space<vmem>>, %arg7: memref<2x2x64xf32, #tpu.memory_space<vmem>>) attributes {dimension_semantics = [#tpu.dimension_semantics<parallel>], iteration_bounds = array<i64: 1>, scalar_prefetch = 0 : i64, scratch_operands = 0 : i64, tpu.core_type = #tpu.core_type<tc>, window_params = [{transform_indices = @transform_0, window_bounds = array<i64: 2, 8, 64>}, {pipeline_mode = #tpu.pipeline_mode<synchronous>, transform_indices = @transform_1, window_bounds = array<i64: 64, 192>}, {pipeline_mode = #tpu.pipeline_mode<synchronous>, transform_indices = @transform_2, window_bounds = array<i64: 1, 192>}, {pipeline_mode = #tpu.pipeline_mode<synchronous>, transform_indices = @transform_3, window_bounds = array<i64: 64, 64>}, {pipeline_mode = #tpu.pipeline_mode<synchronous>, transform_indices = @transform_4, window_bounds = array<i64: 1, 64>}, {transform_indices = @transform_5, window_bounds = array<i64: 2, 512>}, {transform_indices = @transform_6, window_bounds = array<i64: 2, 2, 64>}]} {
    %c0 = arith.constant 0 : index
    %c0_0 = arith.constant 0 : index
    %c0_1 = arith.constant 0 : index
    %0 = vector.load %arg1[%c0, %c0_0, %c0_1] : memref<2x8x64xf32, #tpu.memory_space<vmem>>, vector<2x8x64xf32>
    %1 = vector.shape_cast %0 : vector<2x8x64xf32> to vector<16x64xf32>
    %c0_2 = arith.constant 0 : index
    %c0_3 = arith.constant 0 : index
    %2 = vector.load %arg2[%c0_2, %c0_3] : memref<64x192xf32, #tpu.memory_space<vmem>>, vector<64x192xf32>
    %cst = arith.constant dense<0.000000e+00> : vector<16x192xf32>
    %3 = tpu.matmul %1, %2, %cst {dimension_numbers = #tpu.dot_dimension_numbers<[1], [0], [0], [1], [0, 0, 1, 1], [], []>} : vector<16x64xf32>, vector<64x192xf32>, vector<16x192xf32> -> vector<16x192xf32>
    %c0_4 = arith.constant 0 : index
    %c0_5 = arith.constant 0 : index
    %4 = vector.load %arg3[%c0_4, %c0_5] : memref<1x192xf32, #tpu.memory_space<vmem>>, vector<1x192xf32>
    %5 = vector.shape_cast %4 : vector<1x192xf32> to vector<192xf32>
    %6 = vector.shape_cast %5 : vector<192xf32> to vector<1x192xf32>
    %7 = vector.broadcast %6 : vector<1x192xf32> to vector<16x192xf32>
    %8 = arith.addf %3, %7 : vector<16x192xf32>
    %9 = vector.shape_cast %8 : vector<16x192xf32> to vector<2x8x192xf32>
    %c0_6 = arith.constant 0 : index
    %c0_7 = arith.constant 0 : index
    %10 = vector.load %arg4[%c0_6, %c0_7] : memref<64x64xf32, #tpu.memory_space<vmem>>, vector<64x64xf32>
    %11 = vector.extract_strided_slice %9 {offsets = [0, 0, 0], sizes = [2, 8, 32], strides = [1, 1, 1]} : vector<2x8x192xf32> to vector<2x8x32xf32>
    %12 = vector.extract_strided_slice %9 {offsets = [0, 0, 64], sizes = [2, 8, 32], strides = [1, 1, 1]} : vector<2x8x192xf32> to vector<2x8x32xf32>
    %13 = vector.extract_strided_slice %9 {offsets = [0, 0, 128], sizes = [2, 8, 32], strides = [1, 1, 1]} : vector<2x8x192xf32> to vector<2x8x32xf32>
    "tpu.trace_start"() <{level = 10 : i32, message = "bqd,bkd->bqk"}> : () -> ()
    %cst_8 = arith.constant dense<0.000000e+00> : vector<2x8x8xf32>
    %14 = tpu.matmul %11, %12, %cst_8 {dimension_numbers = #tpu.dot_dimension_numbers<[2], [2], [1], [1], [0, 0, 0, 1, 1, 1], [0], [0]>} : vector<2x8x32xf32>, vector<2x8x32xf32>, vector<2x8x8xf32> -> vector<2x8x8xf32>
    "tpu.trace_stop"() : () -> ()
    %cst_9 = arith.constant dense<0xFF800000> : vector<2x8xf32>
    %15 = vector.multi_reduction <maximumf>, %14, %cst_9 [2] : vector<2x8x8xf32> to vector<2x8xf32>
    %16 = vector.shape_cast %15 : vector<2x8xf32> to vector<2x8x1xf32>
    %17 = vector.broadcast %16 : vector<2x8x1xf32> to vector<2x8x8xf32>
    %18 = arith.subf %14, %17 : vector<2x8x8xf32>
    %19 = math.exp %18 : vector<2x8x8xf32>
    %cst_10 = arith.constant dense<0.000000e+00> : vector<2x8xf32>
    %20 = vector.multi_reduction <add>, %19, %cst_10 [2] : vector<2x8x8xf32> to vector<2x8xf32>
    %21 = vector.shape_cast %20 : vector<2x8xf32> to vector<2x8x1xf32>
    %22 = tpu.reciprocal %21 {approx = true} : vector<2x8x1xf32> -> vector<2x8x1xf32>
    %23 = arith.mulf %21, %22 : vector<2x8x1xf32>
    %cst_11 = arith.constant 2.000000e+00 : f32
    %24 = vector.broadcast %cst_11 : f32 to vector<2x8x1xf32>
    %25 = arith.subf %24, %23 : vector<2x8x1xf32>
    %26 = arith.mulf %22, %25 : vector<2x8x1xf32>
    %27 = vector.broadcast %26 : vector<2x8x1xf32> to vector<2x8x8xf32>
    %28 = arith.mulf %19, %27 : vector<2x8x8xf32>
    %29 = vector.shape_cast %28 : vector<2x8x8xf32> to vector<2x64xf32>
    %c0_12 = arith.constant 0 : index
    %c0_13 = arith.constant 0 : index
    %c0_14 = arith.constant 0 : index
    %30 = vector.load %arg7[%c0_12, %c0_13, %c0_14] : memref<2x2x64xf32, #tpu.memory_space<vmem>>, vector<2x1x64xf32>
    %31 = vector.shape_cast %30 : vector<2x1x64xf32> to vector<2x64xf32>
    %32 = vector.shape_cast %29 : vector<2x64xf32> to vector<2x1x64xf32>
    tpu.vector_store %arg7[%c0_12, %c0_13, %c0_14], %32 {strides = array<i32>} : memref<2x2x64xf32, #tpu.memory_space<vmem>>, vector<2x1x64xf32>,
    "tpu.trace_start"() <{level = 10 : i32, message = "bqk,bkd->bqd"}> : () -> ()
    %cst_15 = arith.constant dense<0.000000e+00> : vector<2x8x32xf32>
    %33 = tpu.matmul %28, %13, %cst_15 {dimension_numbers = #tpu.dot_dimension_numbers<[2], [1], [1], [2], [0, 0, 0, 1, 1, 2], [0], [0]>} : vector<2x8x8xf32>, vector<2x8x32xf32>, vector<2x8x32xf32> -> vector<2x8x32xf32>
    "tpu.trace_stop"() : () -> ()
    %34 = vector.shape_cast %33 : vector<2x8x32xf32> to vector<16x32xf32>
    %35 = vector.extract_strided_slice %10 {offsets = [0, 0], sizes = [32, 64], strides = [1, 1]} : vector<64x64xf32> to vector<32x64xf32>
    %cst_16 = arith.constant dense<0.000000e+00> : vector<16x64xf32>
    %36 = tpu.matmul %34, %35, %cst_16 {dimension_numbers = #tpu.dot_dimension_numbers<[1], [0], [0], [1], [0, 0, 1, 1], [], []>} : vector<16x32xf32>, vector<32x64xf32>, vector<16x64xf32> -> vector<16x64xf32>
    %37 = vector.extract_strided_slice %9 {offsets = [0, 0, 32], sizes = [2, 8, 32], strides = [1, 1, 1]} : vector<2x8x192xf32> to vector<2x8x32xf32>
    %38 = vector.extract_strided_slice %9 {offsets = [0, 0, 96], sizes = [2, 8, 32], strides = [1, 1, 1]} : vector<2x8x192xf32> to vector<2x8x32xf32>
    %39 = vector.extract_strided_slice %9 {offsets = [0, 0, 160], sizes = [2, 8, 32], strides = [1, 1, 1]} : vector<2x8x192xf32> to vector<2x8x32xf32>
    "tpu.trace_start"() <{level = 10 : i32, message = "bqd,bkd->bqk"}> : () -> ()
    %cst_17 = arith.constant dense<0.000000e+00> : vector<2x8x8xf32>
    %40 = tpu.matmul %37, %38, %cst_17 {dimension_numbers = #tpu.dot_dimension_numbers<[2], [2], [1], [1], [0, 0, 0, 1, 1, 1], [0], [0]>} : vector<2x8x32xf32>, vector<2x8x32xf32>, vector<2x8x8xf32> -> vector<2x8x8xf32>
    "tpu.trace_stop"() : () -> ()
    %cst_18 = arith.constant dense<0xFF800000> : vector<2x8xf32>
    %41 = vector.multi_reduction <maximumf>, %40, %cst_18 [2] : vector<2x8x8xf32> to vector<2x8xf32>
    %42 = vector.shape_cast %41 : vector<2x8xf32> to vector<2x8x1xf32>
    %43 = vector.broadcast %42 : vector<2x8x1xf32> to vector<2x8x8xf32>
    %44 = arith.subf %40, %43 : vector<2x8x8xf32>
    %45 = math.exp %44 : vector<2x8x8xf32>
    %cst_19 = arith.constant dense<0.000000e+00> : vector<2x8xf32>
    %46 = vector.multi_reduction <add>, %45, %cst_19 [2] : vector<2x8x8xf32> to vector<2x8xf32>
    %47 = vector.shape_cast %46 : vector<2x8xf32> to vector<2x8x1xf32>
    %48 = tpu.reciprocal %47 {approx = true} : vector<2x8x1xf32> -> vector<2x8x1xf32>
    %49 = arith.mulf %47, %48 : vector<2x8x1xf32>
    %cst_20 = arith.constant 2.000000e+00 : f32
    %50 = vector.broadcast %cst_20 : f32 to vector<2x8x1xf32>
    %51 = arith.subf %50, %49 : vector<2x8x1xf32>
    %52 = arith.mulf %48, %51 : vector<2x8x1xf32>
    %53 = vector.broadcast %52 : vector<2x8x1xf32> to vector<2x8x8xf32>
    %54 = arith.mulf %45, %53 : vector<2x8x8xf32>
    %55 = vector.shape_cast %54 : vector<2x8x8xf32> to vector<2x64xf32>
    %c0_21 = arith.constant 0 : index
    %c1 = arith.constant 1 : index
    %c0_22 = arith.constant 0 : index
    %56 = vector.load %arg7[%c0_21, %c1, %c0_22] : memref<2x2x64xf32, #tpu.memory_space<vmem>>, vector<2x1x64xf32>
    %57 = vector.shape_cast %56 : vector<2x1x64xf32> to vector<2x64xf32>
    %58 = vector.shape_cast %55 : vector<2x64xf32> to vector<2x1x64xf32>
    tpu.vector_store %arg7[%c0_21, %c1, %c0_22], %58 {strides = array<i32>} : memref<2x2x64xf32, #tpu.memory_space<vmem>>, vector<2x1x64xf32>,
    "tpu.trace_start"() <{level = 10 : i32, message = "bqk,bkd->bqd"}> : () -> ()
    %cst_23 = arith.constant dense<0.000000e+00> : vector<2x8x32xf32>
    %59 = tpu.matmul %54, %39, %cst_23 {dimension_numbers = #tpu.dot_dimension_numbers<[2], [1], [1], [2], [0, 0, 0, 1, 1, 2], [0], [0]>} : vector<2x8x8xf32>, vector<2x8x32xf32>, vector<2x8x32xf32> -> vector<2x8x32xf32>
    "tpu.trace_stop"() : () -> ()
    %60 = vector.shape_cast %59 : vector<2x8x32xf32> to vector<16x32xf32>
    %61 = vector.extract_strided_slice %10 {offsets = [32, 0], sizes = [32, 64], strides = [1, 1]} : vector<64x64xf32> to vector<32x64xf32>
    %cst_24 = arith.constant dense<0.000000e+00> : vector<16x64xf32>
    %62 = tpu.matmul %60, %61, %cst_24 {dimension_numbers = #tpu.dot_dimension_numbers<[1], [0], [0], [1], [0, 0, 1, 1], [], []>} : vector<16x32xf32>, vector<32x64xf32>, vector<16x64xf32> -> vector<16x64xf32>
    %63 = arith.addf %36, %62 : vector<16x64xf32>
    %c0_25 = arith.constant 0 : index
    %c0_26 = arith.constant 0 : index
    %64 = vector.load %arg5[%c0_25, %c0_26] : memref<1x64xf32, #tpu.memory_space<vmem>>, vector<1x64xf32>
    %65 = vector.shape_cast %64 : vector<1x64xf32> to vector<64xf32>
    %66 = vector.shape_cast %65 : vector<64xf32> to vector<1x64xf32>
    %67 = vector.broadcast %66 : vector<1x64xf32> to vector<16x64xf32>
    %68 = arith.addf %63, %67 : vector<16x64xf32>
    %69 = vector.shape_cast %68 : vector<16x64xf32> to vector<2x512xf32>
    %c0_27 = arith.constant 0 : index
    %c0_28 = arith.constant 0 : index
    %70 = vector.load %arg6[%c0_27, %c0_28] : memref<2x512xf32, #tpu.memory_space<vmem>>, vector<2x512xf32>
    tpu.vector_store %arg6[%c0_27, %c0_28], %69 {strides = array<i32>} : memref<2x512xf32, #tpu.memory_space<vmem>>, vector<2x512xf32>,
    return
  }
  func.func @transform_0(%arg0: i32) -> (i32, i32, i32) {
    %c0_i32 = arith.constant 0 : i32
    %c0_i32_0 = arith.constant 0 : i32
    %c0_i32_1 = arith.constant 0 : i32
    return %arg0, %c0_i32, %c0_i32_0 : i32, i32, i32
  }
  func.func @transform_1(%arg0: i32) -> (i32, i32) {
    %c0_i32 = arith.constant 0 : i32
    %c0_i32_0 = arith.constant 0 : i32
    %c0_i32_1 = arith.constant 0 : i32
    return %c0_i32, %c0_i32_0 : i32, i32
  }
  func.func @transform_2(%arg0: i32) -> (i32, i32) {
    %c0_i32 = arith.constant 0 : i32
    %c0_i32_0 = arith.constant 0 : i32
    %c0_i32_1 = arith.constant 0 : i32
    return %c0_i32, %c0_i32_0 : i32, i32
  }
  func.func @transform_3(%arg0: i32) -> (i32, i32) {
    %c0_i32 = arith.constant 0 : i32
    %c0_i32_0 = arith.constant 0 : i32
    %c0_i32_1 = arith.constant 0 : i32
    return %c0_i32, %c0_i32_0 : i32, i32
  }
  func.func @transform_4(%arg0: i32) -> (i32, i32) {
    %c0_i32 = arith.constant 0 : i32
    %c0_i32_0 = arith.constant 0 : i32
    %c0_i32_1 = arith.constant 0 : i32
    return %c0_i32, %c0_i32_0 : i32, i32
  }
  func.func @transform_5(%arg0: i32) -> (i32, i32) {
    %c0_i32 = arith.constant 0 : i32
    %c0_i32_0 = arith.constant 0 : i32
    return %arg0, %c0_i32 : i32, i32
  }
  func.func @transform_6(%arg0: i32) -> (i32, i32, i32) {
    %c0_i32 = arith.constant 0 : i32
    %c0_i32_0 = arith.constant 0 : i32
    %c0_i32_1 = arith.constant 0 : i32
    return %arg0, %c0_i32, %c0_i32_0 : i32, i32, i32
  }
}

module attributes {stable_mosaic.version = 11 : i64} {
  func.func @_mha_kernel(%arg0: i32, %arg1: memref<2x8x64xf32, #tpu.memory_space<vmem>>, %arg2: memref<64x192xf32, #tpu.memory_space<vmem>>, %arg3: memref<1x192xf32, #tpu.memory_space<vmem>>, %arg4: memref<64x64xf32, #tpu.memory_space<vmem>>, %arg5: memref<1x64xf32, #tpu.memory_space<vmem>>, %arg6: memref<2x8x64xf32, #tpu.memory_space<vmem>>, %arg7: memref<2x2x8x8xf32, #tpu.memory_space<vmem>>) attributes {dimension_semantics = [#tpu.dimension_semantics<parallel>], iteration_bounds = array<i64: 1>, scalar_prefetch = 0 : i64, scratch_operands = 0 : i64, tpu.core_type = #tpu.core_type<tc>, window_params = [{transform_indices = @transform_0, window_bounds = array<i64: 2, 8, 64>}, {pipeline_mode = #tpu.pipeline_mode<synchronous>, transform_indices = @transform_1, window_bounds = array<i64: 64, 192>}, {pipeline_mode = #tpu.pipeline_mode<synchronous>, transform_indices = @transform_2, window_bounds = array<i64: 1, 192>}, {pipeline_mode = #tpu.pipeline_mode<synchronous>, transform_indices = @transform_3, window_bounds = array<i64: 64, 64>}, {pipeline_mode = #tpu.pipeline_mode<synchronous>, transform_indices = @transform_4, window_bounds = array<i64: 1, 64>}, {transform_indices = @transform_5, window_bounds = array<i64: 2, 8, 64>}, {transform_indices = @transform_6, window_bounds = array<i64: 2, 2, 8, 8>}]} {
    %c0 = arith.constant 0 : index
    %c0_0 = arith.constant 0 : index
    %c0_1 = arith.constant 0 : index
    %0 = vector.load %arg1[%c0, %c0_0, %c0_1] : memref<2x8x64xf32, #tpu.memory_space<vmem>>, vector<2x8x64xf32>
    %1 = vector.shape_cast %0 : vector<2x8x64xf32> to vector<16x64xf32>
    %c0_2 = arith.constant 0 : index
    %c0_3 = arith.constant 0 : index
    %2 = vector.load %arg2[%c0_2, %c0_3] : memref<64x192xf32, #tpu.memory_space<vmem>>, vector<64x192xf32>
    %cst = arith.constant dense<0.000000e+00> : vector<16x192xf32>
    %3 = tpu.matmul %1, %2, %cst {dimension_numbers = #tpu.dot_dimension_numbers<[1], [0], [0], [1], [0, 0, 1, 1], [], []>} : vector<16x64xf32>, vector<64x192xf32>, vector<16x192xf32> -> vector<16x192xf32>
    %c0_4 = arith.constant 0 : index
    %c0_5 = arith.constant 0 : index
    %4 = vector.load %arg3[%c0_4, %c0_5] : memref<1x192xf32, #tpu.memory_space<vmem>>, vector<1x192xf32>
    %5 = vector.shape_cast %4 : vector<1x192xf32> to vector<192xf32>
    %6 = vector.shape_cast %5 : vector<192xf32> to vector<1x192xf32>
    %7 = vector.broadcast %6 : vector<1x192xf32> to vector<16x192xf32>
    %8 = arith.addf %3, %7 : vector<16x192xf32>
    %9 = vector.shape_cast %8 : vector<16x192xf32> to vector<2x8x192xf32>
    %c0_6 = arith.constant 0 : index
    %c0_7 = arith.constant 0 : index
    %10 = vector.load %arg4[%c0_6, %c0_7] : memref<64x64xf32, #tpu.memory_space<vmem>>, vector<64x64xf32>
    %11 = vector.extract_strided_slice %9 {offsets = [0, 0, 0], sizes = [2, 8, 32], strides = [1, 1, 1]} : vector<2x8x192xf32> to vector<2x8x32xf32>
    %12 = vector.extract_strided_slice %9 {offsets = [0, 0, 64], sizes = [2, 8, 32], strides = [1, 1, 1]} : vector<2x8x192xf32> to vector<2x8x32xf32>
    %13 = vector.extract_strided_slice %9 {offsets = [0, 0, 128], sizes = [2, 8, 32], strides = [1, 1, 1]} : vector<2x8x192xf32> to vector<2x8x32xf32>
    "tpu.trace_start"() <{level = 10 : i32, message = "bqd,bkd->bqk"}> : () -> ()
    %cst_8 = arith.constant dense<0.000000e+00> : vector<2x8x8xf32>
    %14 = tpu.matmul %11, %12, %cst_8 {dimension_numbers = #tpu.dot_dimension_numbers<[2], [2], [1], [1], [0, 0, 0, 1, 1, 1], [0], [0]>} : vector<2x8x32xf32>, vector<2x8x32xf32>, vector<2x8x8xf32> -> vector<2x8x8xf32>
    "tpu.trace_stop"() : () -> ()
    %cst_9 = arith.constant dense<0xFF800000> : vector<2x8xf32>
    %15 = vector.multi_reduction <maximumf>, %14, %cst_9 [2] : vector<2x8x8xf32> to vector<2x8xf32>
    %16 = vector.shape_cast %15 : vector<2x8xf32> to vector<2x8x1xf32>
    %17 = vector.broadcast %16 : vector<2x8x1xf32> to vector<2x8x8xf32>
    %18 = arith.subf %14, %17 : vector<2x8x8xf32>
    %19 = math.exp %18 : vector<2x8x8xf32>
    %cst_10 = arith.constant dense<0.000000e+00> : vector<2x8xf32>
    %20 = vector.multi_reduction <add>, %19, %cst_10 [2] : vector<2x8x8xf32> to vector<2x8xf32>
    %21 = vector.shape_cast %20 : vector<2x8xf32> to vector<2x8x1xf32>
    %22 = tpu.reciprocal %21 {approx = true} : vector<2x8x1xf32> -> vector<2x8x1xf32>
    %23 = arith.mulf %21, %22 : vector<2x8x1xf32>
    %cst_11 = arith.constant 2.000000e+00 : f32
    %24 = vector.broadcast %cst_11 : f32 to vector<2x8x1xf32>
    %25 = arith.subf %24, %23 : vector<2x8x1xf32>
    %26 = arith.mulf %22, %25 : vector<2x8x1xf32>
    %27 = vector.broadcast %26 : vector<2x8x1xf32> to vector<2x8x8xf32>
    %28 = arith.mulf %19, %27 : vector<2x8x8xf32>
    %c0_12 = arith.constant 0 : index
    %c0_13 = arith.constant 0 : index
    %c0_14 = arith.constant 0 : index
    %c0_15 = arith.constant 0 : index
    %29 = vector.load %arg7[%c0_12, %c0_13, %c0_14, %c0_15] : memref<2x2x8x8xf32, #tpu.memory_space<vmem>>, vector<2x1x8x8xf32>
    %30 = vector.shape_cast %29 : vector<2x1x8x8xf32> to vector<2x8x8xf32>
    %31 = vector.shape_cast %28 : vector<2x8x8xf32> to vector<2x1x8x8xf32>
    tpu.vector_store %arg7[%c0_12, %c0_13, %c0_14, %c0_15], %31 {strides = array<i32>} : memref<2x2x8x8xf32, #tpu.memory_space<vmem>>, vector<2x1x8x8xf32>,
    "tpu.trace_start"() <{level = 10 : i32, message = "bqk,bkd->bqd"}> : () -> ()
    %cst_16 = arith.constant dense<0.000000e+00> : vector<2x8x32xf32>
    %32 = tpu.matmul %28, %13, %cst_16 {dimension_numbers = #tpu.dot_dimension_numbers<[2], [1], [1], [2], [0, 0, 0, 1, 1, 2], [0], [0]>} : vector<2x8x8xf32>, vector<2x8x32xf32>, vector<2x8x32xf32> -> vector<2x8x32xf32>
    "tpu.trace_stop"() : () -> ()
    %33 = vector.shape_cast %32 : vector<2x8x32xf32> to vector<16x32xf32>
    %34 = vector.extract_strided_slice %10 {offsets = [0, 0], sizes = [32, 64], strides = [1, 1]} : vector<64x64xf32> to vector<32x64xf32>
    %cst_17 = arith.constant dense<0.000000e+00> : vector<16x64xf32>
    %35 = tpu.matmul %33, %34, %cst_17 {dimension_numbers = #tpu.dot_dimension_numbers<[1], [0], [0], [1], [0, 0, 1, 1], [], []>} : vector<16x32xf32>, vector<32x64xf32>, vector<16x64xf32> -> vector<16x64xf32>
    %36 = vector.extract_strided_slice %9 {offsets = [0, 0, 32], sizes = [2, 8, 32], strides = [1, 1, 1]} : vector<2x8x192xf32> to vector<2x8x32xf32>
    %37 = vector.extract_strided_slice %9 {offsets = [0, 0, 96], sizes = [2, 8, 32], strides = [1, 1, 1]} : vector<2x8x192xf32> to vector<2x8x32xf32>
    %38 = vector.extract_strided_slice %9 {offsets = [0, 0, 160], sizes = [2, 8, 32], strides = [1, 1, 1]} : vector<2x8x192xf32> to vector<2x8x32xf32>
    "tpu.trace_start"() <{level = 10 : i32, message = "bqd,bkd->bqk"}> : () -> ()
    %cst_18 = arith.constant dense<0.000000e+00> : vector<2x8x8xf32>
    %39 = tpu.matmul %36, %37, %cst_18 {dimension_numbers = #tpu.dot_dimension_numbers<[2], [2], [1], [1], [0, 0, 0, 1, 1, 1], [0], [0]>} : vector<2x8x32xf32>, vector<2x8x32xf32>, vector<2x8x8xf32> -> vector<2x8x8xf32>
    "tpu.trace_stop"() : () -> ()
    %cst_19 = arith.constant dense<0xFF800000> : vector<2x8xf32>
    %40 = vector.multi_reduction <maximumf>, %39, %cst_19 [2] : vector<2x8x8xf32> to vector<2x8xf32>
    %41 = vector.shape_cast %40 : vector<2x8xf32> to vector<2x8x1xf32>
    %42 = vector.broadcast %41 : vector<2x8x1xf32> to vector<2x8x8xf32>
    %43 = arith.subf %39, %42 : vector<2x8x8xf32>
    %44 = math.exp %43 : vector<2x8x8xf32>
    %cst_20 = arith.constant dense<0.000000e+00> : vector<2x8xf32>
    %45 = vector.multi_reduction <add>, %44, %cst_20 [2] : vector<2x8x8xf32> to vector<2x8xf32>
    %46 = vector.shape_cast %45 : vector<2x8xf32> to vector<2x8x1xf32>
    %47 = tpu.reciprocal %46 {approx = true} : vector<2x8x1xf32> -> vector<2x8x1xf32>
    %48 = arith.mulf %46, %47 : vector<2x8x1xf32>
    %cst_21 = arith.constant 2.000000e+00 : f32
    %49 = vector.broadcast %cst_21 : f32 to vector<2x8x1xf32>
    %50 = arith.subf %49, %48 : vector<2x8x1xf32>
    %51 = arith.mulf %47, %50 : vector<2x8x1xf32>
    %52 = vector.broadcast %51 : vector<2x8x1xf32> to vector<2x8x8xf32>
    %53 = arith.mulf %44, %52 : vector<2x8x8xf32>
    %c0_22 = arith.constant 0 : index
    %c1 = arith.constant 1 : index
    %c0_23 = arith.constant 0 : index
    %c0_24 = arith.constant 0 : index
    %54 = vector.load %arg7[%c0_22, %c1, %c0_23, %c0_24] : memref<2x2x8x8xf32, #tpu.memory_space<vmem>>, vector<2x1x8x8xf32>
    %55 = vector.shape_cast %54 : vector<2x1x8x8xf32> to vector<2x8x8xf32>
    %56 = vector.shape_cast %53 : vector<2x8x8xf32> to vector<2x1x8x8xf32>
    tpu.vector_store %arg7[%c0_22, %c1, %c0_23, %c0_24], %56 {strides = array<i32>} : memref<2x2x8x8xf32, #tpu.memory_space<vmem>>, vector<2x1x8x8xf32>,
    "tpu.trace_start"() <{level = 10 : i32, message = "bqk,bkd->bqd"}> : () -> ()
    %cst_25 = arith.constant dense<0.000000e+00> : vector<2x8x32xf32>
    %57 = tpu.matmul %53, %38, %cst_25 {dimension_numbers = #tpu.dot_dimension_numbers<[2], [1], [1], [2], [0, 0, 0, 1, 1, 2], [0], [0]>} : vector<2x8x8xf32>, vector<2x8x32xf32>, vector<2x8x32xf32> -> vector<2x8x32xf32>
    "tpu.trace_stop"() : () -> ()
    %58 = vector.shape_cast %57 : vector<2x8x32xf32> to vector<16x32xf32>
    %59 = vector.extract_strided_slice %10 {offsets = [32, 0], sizes = [32, 64], strides = [1, 1]} : vector<64x64xf32> to vector<32x64xf32>
    %cst_26 = arith.constant dense<0.000000e+00> : vector<16x64xf32>
    %60 = tpu.matmul %58, %59, %cst_26 {dimension_numbers = #tpu.dot_dimension_numbers<[1], [0], [0], [1], [0, 0, 1, 1], [], []>} : vector<16x32xf32>, vector<32x64xf32>, vector<16x64xf32> -> vector<16x64xf32>
    %61 = arith.addf %35, %60 : vector<16x64xf32>
    %c0_27 = arith.constant 0 : index
    %c0_28 = arith.constant 0 : index
    %62 = vector.load %arg5[%c0_27, %c0_28] : memref<1x64xf32, #tpu.memory_space<vmem>>, vector<1x64xf32>
    %63 = vector.shape_cast %62 : vector<1x64xf32> to vector<64xf32>
    %64 = vector.shape_cast %63 : vector<64xf32> to vector<1x64xf32>
    %65 = vector.broadcast %64 : vector<1x64xf32> to vector<16x64xf32>
    %66 = arith.addf %61, %65 : vector<16x64xf32>
    %67 = vector.shape_cast %66 : vector<16x64xf32> to vector<2x8x64xf32>
    %c0_29 = arith.constant 0 : index
    %c0_30 = arith.constant 0 : index
    %c0_31 = arith.constant 0 : index
    %68 = vector.load %arg6[%c0_29, %c0_30, %c0_31] : memref<2x8x64xf32, #tpu.memory_space<vmem>>, vector<2x8x64xf32>
    tpu.vector_store %arg6[%c0_29, %c0_30, %c0_31], %67 {strides = array<i32>} : memref<2x8x64xf32, #tpu.memory_space<vmem>>, vector<2x8x64xf32>,
    return
  }
  func.func @transform_0(%arg0: i32) -> (i32, i32, i32) {
    %c0_i32 = arith.constant 0 : i32
    %c0_i32_0 = arith.constant 0 : i32
    %c0_i32_1 = arith.constant 0 : i32
    return %arg0, %c0_i32, %c0_i32_0 : i32, i32, i32
  }
  func.func @transform_1(%arg0: i32) -> (i32, i32) {
    %c0_i32 = arith.constant 0 : i32
    %c0_i32_0 = arith.constant 0 : i32
    %c0_i32_1 = arith.constant 0 : i32
    return %c0_i32, %c0_i32_0 : i32, i32
  }
  func.func @transform_2(%arg0: i32) -> (i32, i32) {
    %c0_i32 = arith.constant 0 : i32
    %c0_i32_0 = arith.constant 0 : i32
    %c0_i32_1 = arith.constant 0 : i32
    return %c0_i32, %c0_i32_0 : i32, i32
  }
  func.func @transform_3(%arg0: i32) -> (i32, i32) {
    %c0_i32 = arith.constant 0 : i32
    %c0_i32_0 = arith.constant 0 : i32
    %c0_i32_1 = arith.constant 0 : i32
    return %c0_i32, %c0_i32_0 : i32, i32
  }
  func.func @transform_4(%arg0: i32) -> (i32, i32) {
    %c0_i32 = arith.constant 0 : i32
    %c0_i32_0 = arith.constant 0 : i32
    %c0_i32_1 = arith.constant 0 : i32
    return %c0_i32, %c0_i32_0 : i32, i32
  }
  func.func @transform_5(%arg0: i32) -> (i32, i32, i32) {
    %c0_i32 = arith.constant 0 : i32
    %c0_i32_0 = arith.constant 0 : i32
    %c0_i32_1 = arith.constant 0 : i32
    return %arg0, %c0_i32, %c0_i32_0 : i32, i32, i32
  }
  func.func @transform_6(%arg0: i32) -> (i32, i32, i32, i32) {
    %c0_i32 = arith.constant 0 : i32
    %c0_i32_0 = arith.constant 0 : i32
    %c0_i32_1 = arith.constant 0 : i32
    %c0_i32_2 = arith.constant 0 : i32
    return %arg0, %c0_i32, %c0_i32_0, %c0_i32_1 : i32, i32, i32, i32
  }
}

</mosaic_0001>

<llo_original>
// kernel: tpu_custom_call.1
$region0: #{tpu_custom_call.1}
  #allocation0 [shape = 'u32[]', space=smem, size = 0x4, offset = 0x4, fixed_abs, tag = 'smem constant byte address 0x4 - core index']
  #allocation1 [shape = 'u32[144,128]{1,0:T(1,128)}', space=vmem, size = 0x12000, scoped, tag = 'internal scratch']
  %s0 = inlined_call_operand.hbm [shape: f32[2,8,64], index: 0, kind: input, shape index: {}]
  %s1 = inlined_call_operand.hbm [shape: f32[64,192], index: 1, kind: input, shape index: {}]
  %s2 = inlined_call_operand.vmem [shape: f32[1,192], index: 2, kind: input, shape index: {}]
  %s3 = inlined_call_operand.hbm [shape: f32[64,64], index: 3, kind: input, shape index: {}]
  %s4 = inlined_call_operand.vmem [shape: f32[1,64], index: 4, kind: input, shape index: {}]
  %s5 = inlined_call_operand.hbm [shape: f32[2,8,64], index: 5, kind: output, shape index: {0}]
  %s6 = inlined_call_operand.hbm [shape: f32[2,2,8,8], index: 6, kind: output, shape index: {1}]
  %7 = xla_tuple %s5, %s6
  %s8 = sld [smem:[#allocation0]]
  $region50: #{tpu_custom_call.1} parent=0
    _
  %s10 = ssub.s32 1, %s8
  %s11 = scalar_select 0, %s10, %s8
  $region1: #{tpu_custom_call.1} parent=0
    #allocation2 [shape = 'u8[8192]{0}', space=vmem, size = 0x2000, scoped, tag = 'input window, operand 0, single buffered']
    #allocation3 [shape = 's32[1]{0}', space=sflag, size = 0x4, scoped, tag = 'scoped memory for tpu_custom_call.1']
    #allocation4 [shape = 's32[1]{0}', space=sflag, size = 0x4, scoped, tag = 'scoped memory for tpu_custom_call.1']
    #allocation5 [shape = 'u8[65536]{0}', space=vmem, size = 0x10000, scoped, tag = 'input window, operand 1, single buffered']
    #allocation6 [shape = 's32[1]{0}', space=sflag, size = 0x4, scoped, tag = 'scoped memory for tpu_custom_call.1']
    #allocation7 [shape = 'u8[32768]{0}', space=vmem, size = 0x8000, scoped, tag = 'input window, operand 3, single buffered']
    #allocation8 [shape = 'u8[8192]{0}', space=vmem, size = 0x2000, scoped, tag = 'output window, operand 0, single buffered']
    #allocation9 [shape = 'u8[16384]{0}', space=vmem, size = 0x4000, scoped, tag = 'output window, operand 1, single buffered']
    #allocation10 [shape = 's32[1]{0}', space=sflag, size = 0x4, scoped, tag = 'scoped memory for tpu_custom_call.1']
    %12 = vsyncpa [#allocation3], 0
    %13 = vsyncpa [#allocation6], 0
    %14 = vsyncpa [#allocation4], 0
    %15 = vsyncpa [#allocation10], 0
    // Predicated region
    $region2: #{tpu_custom_call.1} parent=1 // pred_check
      _
    $region3: #{tpu_custom_call.1} parent=1 // pred_check_branch
      %17 = sbr.rel (0) target = $region5
    $region4: #{tpu_custom_call.1} parent=1 // pred_region
      %s19 = ssub.s32 256, 256
      %20 = vsyncadd [#allocation3], %s19
      %s21 = sshll.u32 [#allocation2], 4
      %s22 = int_to_ptr.vmem [resolvable:$true] %s21
      %27 = dma.hbm_to_vmem [thread:$0]  %s0, 256, %s22, [#allocation3], 128, 128, 8
    $region5: #{tpu_custom_call.1} parent=1 // pred_fallthru
      _
    // Predicated region
    $region6: #{tpu_custom_call.1} parent=1 // pred_check
      _
    $region7: #{tpu_custom_call.1} parent=1 // pred_check_branch
      %29 = sbr.rel (0) target = $region9
    $region8: #{tpu_custom_call.1} parent=1 // pred_region
      %s31 = ssub.s32 2048, 2048
      %32 = vsyncadd [#allocation6], %s31
      %s33 = sshll.u32 [#allocation5], 4
      %s34 = int_to_ptr.vmem [resolvable:$true] %s33
      %39 = dma.hbm_to_vmem [thread:$0]  %s1, 2048, %s34, [#allocation6], 256, 256, 16
    $region9: #{tpu_custom_call.1} parent=1 // pred_fallthru
      _
    // Predicated region
    $region10: #{tpu_custom_call.1} parent=1 // pred_check
      _
    $region11: #{tpu_custom_call.1} parent=1 // pred_check_branch
      %41 = sbr.rel (0) target = $region13
    $region12: #{tpu_custom_call.1} parent=1 // pred_region
      _
    $region13: #{tpu_custom_call.1} parent=1 // pred_fallthru
      _
    // Predicated region
    $region14: #{tpu_custom_call.1} parent=1 // pred_check
      _
    $region15: #{tpu_custom_call.1} parent=1 // pred_check_branch
      %43 = sbr.rel (0) target = $region17
    $region16: #{tpu_custom_call.1} parent=1 // pred_region
      %s45 = ssub.s32 1024, 1024
      %46 = vsyncadd [#allocation6], %s45
      %s47 = sshll.u32 [#allocation7], 4
      %s48 = int_to_ptr.vmem [resolvable:$true] %s47
      %53 = dma.hbm_to_vmem [thread:$0]  %s3, 1024, %s48, [#allocation6], 128, 128, 8
    $region17: #{tpu_custom_call.1} parent=1 // pred_fallthru
      _
    // Predicated region
    $region18: #{tpu_custom_call.1} parent=1 // pred_check
      _
    $region19: #{tpu_custom_call.1} parent=1 // pred_check_branch
      %55 = sbr.rel (0) target = $region21
    $region20: #{tpu_custom_call.1} parent=1 // pred_region
      _
    $region21: #{tpu_custom_call.1} parent=1 // pred_fallthru
      _
    // Predicated region
    $region22: #{tpu_custom_call.1} parent=1 // pred_check
      _
    $region23: #{tpu_custom_call.1} parent=1 // pred_check_branch
      %57 = sbr.rel (0) target = $region25
    $region24: #{tpu_custom_call.1} parent=1 // pred_region
      %58 = dma.done [#allocation3], 256
    $region25: #{tpu_custom_call.1} parent=1 // pred_fallthru
      _
    // Predicated region
    $region26: #{tpu_custom_call.1} parent=1 // pred_check
      _
    $region27: #{tpu_custom_call.1} parent=1 // pred_check_branch
      %60 = sbr.rel (0) target = $region29
    $region28: #{tpu_custom_call.1} parent=1 // pred_region
      %61 = dma.done [#allocation6], 2048
    $region29: #{tpu_custom_call.1} parent=1 // pred_fallthru
      _
    // Predicated region
    $region30: #{tpu_custom_call.1} parent=1 // pred_check
      _
    $region31: #{tpu_custom_call.1} parent=1 // pred_check_branch
      %63 = sbr.rel (0) target = $region33
    $region32: #{tpu_custom_call.1} parent=1 // pred_region
      %64 = dma.done [#allocation6], 1024
    $region33: #{tpu_custom_call.1} parent=1 // pred_fallthru
      _
    %v65 = vld [vmem:[#allocation2] sm:$0xff]
    %v66 = vld [vmem:[#allocation2 + $0x8] sm:$0xff]
    %v67 = vld [vmem:[#allocation5] sm:$0xff]
    %v68 = vld [vmem:[#allocation5 + $0x8] sm:$0xff]
    %v69 = vld [vmem:[#allocation5 + $0x10] sm:$0xff]
    %v70 = vld [vmem:[#allocation5 + $0x18] sm:$0xff]
    %v71 = vld [vmem:[#allocation5 + $0x20] sm:$0xff]
    %v72 = vld [vmem:[#allocation5 + $0x28] sm:$0xff]
    %v73 = vld [vmem:[#allocation5 + $0x30] sm:$0xff]
    %v74 = vld [vmem:[#allocation5 + $0x38] sm:$0xff]
    %v75 = vld [vmem:[#allocation5 + $0x40] sm:$0xff]
    %v76 = vld [vmem:[#allocation5 + $0x48] sm:$0xff]
    %v77 = vld [vmem:[#allocation5 + $0x50] sm:$0xff]
    %v78 = vld [vmem:[#allocation5 + $0x58] sm:$0xff]
    %v79 = vld [vmem:[#allocation5 + $0x60] sm:$0xff]
    %v80 = vld [vmem:[#allocation5 + $0x68] sm:$0xff]
    %v81 = vld [vmem:[#allocation5 + $0x70] sm:$0xff]
    %v82 = vld [vmem:[#allocation5 + $0x78] sm:$0xff]
    %v83 = vld [vmem:[%s2] sm:$0x3]
    %v85 = vlaneseq
    %v86 = vshrl.u32 %v85, 7
    %v87 = vsub.s32 0, %v86
    %v88 = vrot.slane %v83, %v87
    %v89 = vlaneseq
    %v90 = vshrl.u32 %v89, 7
    %v91 = vsub.s32 1, %v90
    %v92 = vrot.slane %v83, %v91
    %vm95 = vcmask 523264
    %v97 = vsel %vm95, %v65, 0
    %v100 = vsel %vm95, %v66, 0
    %102 = vmatprep.subr.mxu0 %v68
    %103 = vmatpush1.msra.mxu0 %v67
    %104 = vmatprep.subr.mxu0 %v70
    %105 = vmatpush1.msra.mxu0 %v69
    %106 = vmatprep.subr.mxu0 %v72
    %107 = vmatpush1.msra.mxu0 %v71
    %108 = vmatprep.subr.mxu0 %v74
    %109 = vmatpush1.msra.mxu0 %v73
    %110 = vmatprep.subr.mxu0 %v76
    %111 = vmatpush1.msra.mxu0 %v75
    %112 = vmatprep.subr.mxu0 %v78
    %113 = vmatpush1.msra.mxu0 %v77
    %114 = vmatprep.subr.mxu0 %v80
    %115 = vmatpush1.msra.mxu0 %v79
    %116 = vmatprep.subr.mxu0 %v82
    %117 = vmatpush1.msra.mxu0 %v81
    %118 = vmatprep.subr.mxu0 0.0
    %119 = vmatpush1.msra.mxu0 0.0
    %120 = vmatprep.subr.mxu0 0.0
    %121 = vmatpush1.msra.mxu0 0.0
    %122 = vmatprep.subr.mxu0 0.0
    %123 = vmatpush1.msra.mxu0 0.0
    %124 = vmatprep.subr.mxu0 0.0
    %125 = vmatpush1.msra.mxu0 0.0
    %126 = vmatprep.subr.mxu0 0.0
    %127 = vmatpush1.msra.mxu0 0.0
    %128 = vmatprep.subr.mxu0 0.0
    %129 = vmatpush1.msra.mxu0 0.0
    %130 = vmatprep.subr.mxu0 0.0
    %131 = vmatpush1.msra.mxu0 0.0
    %132 = vmatprep.subr.mxu0 0.0
    %133 = vmatpush1.msra.mxu0 0.0
    %134 = vmatprep.subr.mxu0 0.0
    %135 = vmatpush1.msra.mxu0 0.0
    %136 = vmatprep.subr.mxu0 0.0
    %137 = vmatpush1.msra.mxu0 0.0
    %138 = vmatprep.subr.mxu0 0.0
    %139 = vmatpush1.msra.mxu0 0.0
    %140 = vmatprep.subr.mxu0 0.0
    %141 = vmatpush1.msra.mxu0 0.0
    %142 = vmatprep.subr.mxu0 0.0
    %143 = vmatpush1.msra.mxu0 0.0
    %144 = vmatprep.subr.mxu0 0.0
    %145 = vmatpush1.msra.mxu0 0.0
    %146 = vmatprep.subr.mxu0 0.0
    %147 = vmatpush1.msra.mxu0 0.0
    %148 = vmatprep.subr.mxu0 0.0
    %149 = vmatpush1.msra.mxu0 0.0
    %150 = vmatprep.subr.mxu0 0.0
    %151 = vmatpush1.msra.mxu0 0.0
    %152 = vmatprep.subr.mxu0 0.0
    %153 = vmatpush1.msra.mxu0 0.0
    %154 = vmatprep.subr.mxu0 0.0
    %155 = vmatpush1.msra.mxu0 0.0
    %156 = vmatprep.subr.mxu0 0.0
    %157 = vmatpush1.msra.mxu0 0.0
    %158 = vmatprep.subr.mxu0 0.0
    %159 = vmatpush1.msra.mxu0 0.0
    %160 = vmatprep.subr.mxu0 0.0
    %161 = vmatpush1.msra.mxu0 0.0
    %162 = vmatprep.subr.mxu0 0.0
    %163 = vmatpush1.msra.mxu0 0.0
    %164 = vmatprep.subr.mxu0 0.0
    %165 = vmatpush1.msra.mxu0 0.0
    %166 = vmatprep.mubr.f32.mxu0 0.0
    %167 = vmatmul.mubr.f32.gmra.mrb[0].mxu0 %v97
    %v168 = vpop.f32.mrb[0].mxu0
    %v169 = vadd.f32 %v88, %v168
    %v170 = vpop.f32.mrb[0].mxu0
    %v171 = vadd.f32 %v92, %v170
    %172 = vmatprep.mubr.f32.mxu0 0.0
    %173 = vmatmul.mubr.f32.gmra.mrb[0].mxu0 %v100
    %v174 = vpop.f32.mrb[0].mxu0
    %v175 = vadd.f32 %v88, %v174
    %v176 = vpop.f32.mrb[0].mxu0
    %v177 = vadd.f32 %v92, %v176
    %178 = vdwg.mxu0
    %v179 = vld [vmem:[#allocation7] sm:$0xff]
    %v180 = vld [vmem:[#allocation7 + $0x8] sm:$0xff]
    %v181 = vld [vmem:[#allocation7 + $0x10] sm:$0xff]
    %v182 = vld [vmem:[#allocation7 + $0x18] sm:$0xff]
    %v183 = vld [vmem:[#allocation7 + $0x20] sm:$0xff]
    %v184 = vld [vmem:[#allocation7 + $0x28] sm:$0xff]
    %v185 = vld [vmem:[#allocation7 + $0x30] sm:$0xff]
    %v186 = vld [vmem:[#allocation7 + $0x38] sm:$0xff]
    %188 = vrot.lane.b32.xlu0 %v169, 64
    %v189 = vpop.permute.xlu0 %188
    %vm190 = vcmask 261120
    %v191 = vsel %vm190, %v169, 0
    %v193 = vsel %vm190, %v189, 0
    %195 = vmatprep.subr.mxu0 0.0
    %196 = vmatpush1.xpose.msra.mxu0 %v193
    %197 = vmatprep.subr.mxu0 0.0
    %198 = vmatpush1.xpose.msra.mxu0 0.0
    %199 = vmatprep.subr.mxu0 0.0
    %200 = vmatpush1.xpose.msra.mxu0 0.0
    %201 = vmatprep.subr.mxu0 0.0
    %202 = vmatpush1.xpose.msra.mxu0 0.0
    %203 = vmatprep.subr.mxu0 0.0
    %204 = vmatpush1.xpose.msra.mxu0 0.0
    %205 = vmatprep.subr.mxu0 0.0
    %206 = vmatpush1.xpose.msra.mxu0 0.0
    %207 = vmatprep.subr.mxu0 0.0
    %208 = vmatpush1.xpose.msra.mxu0 0.0
    %209 = vmatprep.subr.mxu0 0.0
    %210 = vmatpush1.xpose.msra.mxu0 0.0
    %211 = vmatprep.subr.mxu0 0.0
    %212 = vmatpush1.xpose.msra.mxu0 0.0
    %213 = vmatprep.subr.mxu0 0.0
    %214 = vmatpush1.xpose.msra.mxu0 0.0
    %215 = vmatprep.subr.mxu0 0.0
    %216 = vmatpush1.xpose.msra.mxu0 0.0
    %217 = vmatprep.subr.mxu0 0.0
    %218 = vmatpush1.xpose.msra.mxu0 0.0
    %219 = vmatprep.subr.mxu0 0.0
    %220 = vmatpush1.xpose.msra.mxu0 0.0
    %221 = vmatprep.subr.mxu0 0.0
    %222 = vmatpush1.xpose.msra.mxu0 0.0
    %223 = vmatprep.subr.mxu0 0.0
    %224 = vmatpush1.xpose.msra.mxu0 0.0
    %225 = vmatprep.subr.mxu0 0.0
    %226 = vmatpush1.xpose.msra.mxu0 0.0
    %227 = vmatprep.subr.mxu0 0.0
    %228 = vmatpush1.xpose.msra.mxu0 0.0
    %229 = vmatprep.subr.mxu0 0.0
    %230 = vmatpush1.xpose.msra.mxu0 0.0
    %231 = vmatprep.subr.mxu0 0.0
    %232 = vmatpush1.xpose.msra.mxu0 0.0
    %233 = vmatprep.subr.mxu0 0.0
    %234 = vmatpush1.xpose.msra.mxu0 0.0
    %235 = vmatprep.subr.mxu0 0.0
    %236 = vmatpush1.xpose.msra.mxu0 0.0
    %237 = vmatprep.subr.mxu0 0.0
    %238 = vmatpush1.xpose.msra.mxu0 0.0
    %239 = vmatprep.subr.mxu0 0.0
    %240 = vmatpush1.xpose.msra.mxu0 0.0
    %241 = vmatprep.subr.mxu0 0.0
    %242 = vmatpush1.xpose.msra.mxu0 0.0
    %243 = vmatprep.subr.mxu0 0.0
    %244 = vmatpush1.xpose.msra.mxu0 0.0
    %245 = vmatprep.subr.mxu0 0.0
    %246 = vmatpush1.xpose.msra.mxu0 0.0
    %247 = vmatprep.subr.mxu0 0.0
    %248 = vmatpush1.xpose.msra.mxu0 0.0
    %249 = vmatprep.subr.mxu0 0.0
    %250 = vmatpush1.xpose.msra.mxu0 0.0
    %251 = vmatprep.subr.mxu0 0.0
    %252 = vmatpush1.xpose.msra.mxu0 0.0
    %253 = vmatprep.subr.mxu0 0.0
    %254 = vmatpush1.xpose.msra.mxu0 0.0
    %255 = vmatprep.subr.mxu0 0.0
    %256 = vmatpush1.xpose.msra.mxu0 0.0
    %257 = vmatprep.subr.mxu0 0.0
    %258 = vmatpush1.xpose.msra.mxu0 0.0
    %259 = vmatprep.mubr.f32.mxu0 0.0
    %260 = vmatmul.mubr.f32.gmra.mrb[0].mxu0 %v191
    %v261 = vpop.f32.mrb[0].mxu0
    %v262 = vadd.f32 0.0, %v261
    %v263 = vpop.f32.mrb[0].mxu0
    %264 = vdwg.mxu0
    %266 = vrot.lane.b32.xlu0 %v175, 64
    %v267 = vpop.permute.xlu0 %266
    %v268 = vsel %vm190, %v175, 0
    %v270 = vsel %vm190, %v267, 0
    %272 = vmatprep.subr.mxu0 0.0
    %273 = vmatpush1.xpose.msra.mxu0 %v270
    %274 = vmatprep.subr.mxu0 0.0
    %275 = vmatpush1.xpose.msra.mxu0 0.0
    %276 = vmatprep.subr.mxu0 0.0
    %277 = vmatpush1.xpose.msra.mxu0 0.0
    %278 = vmatprep.subr.mxu0 0.0
    %279 = vmatpush1.xpose.msra.mxu0 0.0
    %280 = vmatprep.subr.mxu0 0.0
    %281 = vmatpush1.xpose.msra.mxu0 0.0
    %282 = vmatprep.subr.mxu0 0.0
    %283 = vmatpush1.xpose.msra.mxu0 0.0
    %284 = vmatprep.subr.mxu0 0.0
    %285 = vmatpush1.xpose.msra.mxu0 0.0
    %286 = vmatprep.subr.mxu0 0.0
    %287 = vmatpush1.xpose.msra.mxu0 0.0
    %288 = vmatprep.subr.mxu0 0.0
    %289 = vmatpush1.xpose.msra.mxu0 0.0
    %290 = vmatprep.subr.mxu0 0.0
    %291 = vmatpush1.xpose.msra.mxu0 0.0
    %292 = vmatprep.subr.mxu0 0.0
    %293 = vmatpush1.xpose.msra.mxu0 0.0
    %294 = vmatprep.subr.mxu0 0.0
    %295 = vmatpush1.xpose.msra.mxu0 0.0
    %296 = vmatprep.subr.mxu0 0.0
    %297 = vmatpush1.xpose.msra.mxu0 0.0
    %298 = vmatprep.subr.mxu0 0.0
    %299 = vmatpush1.xpose.msra.mxu0 0.0
    %300 = vmatprep.subr.mxu0 0.0
    %301 = vmatpush1.xpose.msra.mxu0 0.0
    %302 = vmatprep.subr.mxu0 0.0
    %303 = vmatpush1.xpose.msra.mxu0 0.0
    %304 = vmatprep.subr.mxu0 0.0
    %305 = vmatpush1.xpose.msra.mxu0 0.0
    %306 = vmatprep.subr.mxu0 0.0
    %307 = vmatpush1.xpose.msra.mxu0 0.0
    %308 = vmatprep.subr.mxu0 0.0
    %309 = vmatpush1.xpose.msra.mxu0 0.0
    %310 = vmatprep.subr.mxu0 0.0
    %311 = vmatpush1.xpose.msra.mxu0 0.0
    %312 = vmatprep.subr.mxu0 0.0
    %313 = vmatpush1.xpose.msra.mxu0 0.0
    %314 = vmatprep.subr.mxu0 0.0
    %315 = vmatpush1.xpose.msra.mxu0 0.0
    %316 = vmatprep.subr.mxu0 0.0
    %317 = vmatpush1.xpose.msra.mxu0 0.0
    %318 = vmatprep.subr.mxu0 0.0
    %319 = vmatpush1.xpose.msra.mxu0 0.0
    %320 = vmatprep.subr.mxu0 0.0
    %321 = vmatpush1.xpose.msra.mxu0 0.0
    %322 = vmatprep.subr.mxu0 0.0
    %323 = vmatpush1.xpose.msra.mxu0 0.0
    %324 = vmatprep.subr.mxu0 0.0
    %325 = vmatpush1.xpose.msra.mxu0 0.0
    %326 = vmatprep.subr.mxu0 0.0
    %327 = vmatpush1.xpose.msra.mxu0 0.0
    %328 = vmatprep.subr.mxu0 0.0
    %329 = vmatpush1.xpose.msra.mxu0 0.0
    %330 = vmatprep.subr.mxu0 0.0
    %331 = vmatpush1.xpose.msra.mxu0 0.0
    %332 = vmatprep.subr.mxu0 0.0
    %333 = vmatpush1.xpose.msra.mxu0 0.0
    %334 = vmatprep.subr.mxu0 0.0
    %335 = vmatpush1.xpose.msra.mxu0 0.0
    %336 = vmatprep.mubr.f32.mxu0 0.0
    %337 = vmatmul.mubr.f32.gmra.mrb[0].mxu0 %v268
    %v338 = vpop.f32.mrb[0].mxu0
    %v339 = vadd.f32 0.0, %v338
    %v340 = vpop.f32.mrb[0].mxu0
    %341 = vdwg.mxu0
    %vm342 = vcmask 64512
    %v343 = vsel %vm342, %v262, -inf
    %344 = vmax.xlane.f32.xlu0 %v343
    %v345 = vpop.xlane.xlu0 %344
    %v346 = vsel %vm342, %v339, -inf
    %347 = vmax.xlane.f32.xlu0 %v346
    %v348 = vpop.xlane.xlu0 %347
    %v349 = vsub.f32 %v262, %v345
    %v350 = vsub.f32 %v339, %v348
    %v351 = vmul.f32 %v349, 1.442695
    %v352 = vpow.pop %v351
    %v353 = vmul.f32 %v350, 1.442695
    %v354 = vpow.pop %v353
    %v355 = vsel %vm342, %v352, 0.0
    %356 = vadd.xlane.f32.xlu0 %v355
    %v357 = vpop.xlane.xlu0 %356
    %v358 = vsel %vm342, %v354, 0.0
    %359 = vadd.xlane.f32.xlu0 %v358
    %v360 = vpop.xlane.xlu0 %359
    %v361 = vrcp.pop %v357
    %v362 = vrcp.pop %v360
    %v363 = vmul.f32 %v357, %v361
    %v364 = vmul.f32 %v360, %v362
    %v365 = vsub.f32 2.0, %v363
    %v366 = vsub.f32 2.0, %v364
    %v367 = vmul.f32 %v361, %v365
    %v368 = vmul.f32 %v362, %v366
    %v369 = vmul.f32 %v352, %v367
    %v370 = vmul.f32 %v354, %v368
    %371 = vst.msk [vmem:[#allocation9] sm:$0xff] %vm342, %v369
    %372 = vst.msk [vmem:[#allocation9 + $0x10] sm:$0xff] %vm342, %v370
    %v374 = vsel %vm342, %v369, 0
    %376 = vmatprep.subr.mxu0 0.0
    %377 = vmatpush1.msra.mxu0 %v171
    %378 = vmatprep.subr.mxu0 0.0
    %379 = vmatpush1.msra.mxu0 0.0
    %380 = vmatprep.subr.mxu0 0.0
    %381 = vmatpush1.msra.mxu0 0.0
    %382 = vmatprep.subr.mxu0 0.0
    %383 = vmatpush1.msra.mxu0 0.0
    %384 = vmatprep.subr.mxu0 0.0
    %385 = vmatpush1.msra.mxu0 0.0
    %386 = vmatprep.subr.mxu0 0.0
    %387 = vmatpush1.msra.mxu0 0.0
    %388 = vmatprep.subr.mxu0 0.0
    %389 = vmatpush1.msra.mxu0 0.0
    %390 = vmatprep.subr.mxu0 0.0
    %391 = vmatpush1.msra.mxu0 0.0
    %392 = vmatprep.subr.mxu0 0.0
    %393 = vmatpush1.msra.mxu0 0.0
    %394 = vmatprep.subr.mxu0 0.0
    %395 = vmatpush1.msra.mxu0 0.0
    %396 = vmatprep.subr.mxu0 0.0
    %397 = vmatpush1.msra.mxu0 0.0
    %398 = vmatprep.subr.mxu0 0.0
    %399 = vmatpush1.msra.mxu0 0.0
    %400 = vmatprep.subr.mxu0 0.0
    %401 = vmatpush1.msra.mxu0 0.0
    %402 = vmatprep.subr.mxu0 0.0
    %403 = vmatpush1.msra.mxu0 0.0
    %404 = vmatprep.subr.mxu0 0.0
    %405 = vmatpush1.msra.mxu0 0.0
    %406 = vmatprep.subr.mxu0 0.0
    %407 = vmatpush1.msra.mxu0 0.0
    %408 = vmatprep.subr.mxu0 0.0
    %409 = vmatpush1.msra.mxu0 0.0
    %410 = vmatprep.subr.mxu0 0.0
    %411 = vmatpush1.msra.mxu0 0.0
    %412 = vmatprep.subr.mxu0 0.0
    %413 = vmatpush1.msra.mxu0 0.0
    %414 = vmatprep.subr.mxu0 0.0
    %415 = vmatpush1.msra.mxu0 0.0
    %416 = vmatprep.subr.mxu0 0.0
    %417 = vmatpush1.msra.mxu0 0.0
    %418 = vmatprep.subr.mxu0 0.0
    %419 = vmatpush1.msra.mxu0 0.0
    %420 = vmatprep.subr.mxu0 0.0
    %421 = vmatpush1.msra.mxu0 0.0
    %422 = vmatprep.subr.mxu0 0.0
    %423 = vmatpush1.msra.mxu0 0.0
    %424 = vmatprep.subr.mxu0 0.0
    %425 = vmatpush1.msra.mxu0 0.0
    %426 = vmatprep.subr.mxu0 0.0
    %427 = vmatpush1.msra.mxu0 0.0
    %428 = vmatprep.subr.mxu0 0.0
    %429 = vmatpush1.msra.mxu0 0.0
    %430 = vmatprep.subr.mxu0 0.0
    %431 = vmatpush1.msra.mxu0 0.0
    %432 = vmatprep.subr.mxu0 0.0
    %433 = vmatpush1.msra.mxu0 0.0
    %434 = vmatprep.subr.mxu0 0.0
    %435 = vmatpush1.msra.mxu0 0.0
    %436 = vmatprep.subr.mxu0 0.0
    %437 = vmatpush1.msra.mxu0 0.0
    %438 = vmatprep.subr.mxu0 0.0
    %439 = vmatpush1.msra.mxu0 0.0
    %440 = vmatprep.mubr.f32.mxu0 0.0
    %441 = vmatmul.mubr.f32.gmra.mrb[0].mxu0 %v374
    %v442 = vpop.f32.mrb[0].mxu0
    %v443 = vadd.f32 0.0, %v442
    %v444 = vpop.f32.mrb[0].mxu0
    %445 = vdwg.mxu0
    %v447 = vsel %vm342, %v370, 0
    %449 = vmatprep.subr.mxu0 0.0
    %450 = vmatpush1.msra.mxu0 %v177
    %451 = vmatprep.subr.mxu0 0.0
    %452 = vmatpush1.msra.mxu0 0.0
    %453 = vmatprep.subr.mxu0 0.0
    %454 = vmatpush1.msra.mxu0 0.0
    %455 = vmatprep.subr.mxu0 0.0
    %456 = vmatpush1.msra.mxu0 0.0
    %457 = vmatprep.subr.mxu0 0.0
    %458 = vmatpush1.msra.mxu0 0.0
    %459 = vmatprep.subr.mxu0 0.0
    %460 = vmatpush1.msra.mxu0 0.0
    %461 = vmatprep.subr.mxu0 0.0
    %462 = vmatpush1.msra.mxu0 0.0
    %463 = vmatprep.subr.mxu0 0.0
    %464 = vmatpush1.msra.mxu0 0.0
    %465 = vmatprep.subr.mxu0 0.0
    %466 = vmatpush1.msra.mxu0 0.0
    %467 = vmatprep.subr.mxu0 0.0
    %468 = vmatpush1.msra.mxu0 0.0
    %469 = vmatprep.subr.mxu0 0.0
    %470 = vmatpush1.msra.mxu0 0.0
    %471 = vmatprep.subr.mxu0 0.0
    %472 = vmatpush1.msra.mxu0 0.0
    %473 = vmatprep.subr.mxu0 0.0
    %474 = vmatpush1.msra.mxu0 0.0
    %475 = vmatprep.subr.mxu0 0.0
    %476 = vmatpush1.msra.mxu0 0.0
    %477 = vmatprep.subr.mxu0 0.0
    %478 = vmatpush1.msra.mxu0 0.0
    %479 = vmatprep.subr.mxu0 0.0
    %480 = vmatpush1.msra.mxu0 0.0
    %481 = vmatprep.subr.mxu0 0.0
    %482 = vmatpush1.msra.mxu0 0.0
    %483 = vmatprep.subr.mxu0 0.0
    %484 = vmatpush1.msra.mxu0 0.0
    %485 = vmatprep.subr.mxu0 0.0
    %486 = vmatpush1.msra.mxu0 0.0
    %487 = vmatprep.subr.mxu0 0.0
    %488 = vmatpush1.msra.mxu0 0.0
    %489 = vmatprep.subr.mxu0 0.0
    %490 = vmatpush1.msra.mxu0 0.0
    %491 = vmatprep.subr.mxu0 0.0
    %492 = vmatpush1.msra.mxu0 0.0
    %493 = vmatprep.subr.mxu0 0.0
    %494 = vmatpush1.msra.mxu0 0.0
    %495 = vmatprep.subr.mxu0 0.0
    %496 = vmatpush1.msra.mxu0 0.0
    %497 = vmatprep.subr.mxu0 0.0
    %498 = vmatpush1.msra.mxu0 0.0
    %499 = vmatprep.subr.mxu0 0.0
    %500 = vmatpush1.msra.mxu0 0.0
    %501 = vmatprep.subr.mxu0 0.0
    %502 = vmatpush1.msra.mxu0 0.0
    %503 = vmatprep.subr.mxu0 0.0
    %504 = vmatpush1.msra.mxu0 0.0
    %505 = vmatprep.subr.mxu0 0.0
    %506 = vmatpush1.msra.mxu0 0.0
    %507 = vmatprep.subr.mxu0 0.0
    %508 = vmatpush1.msra.mxu0 0.0
    %509 = vmatprep.subr.mxu0 0.0
    %510 = vmatpush1.msra.mxu0 0.0
    %511 = vmatprep.subr.mxu0 0.0
    %512 = vmatpush1.msra.mxu0 0.0
    %513 = vmatprep.mubr.f32.mxu0 0.0
    %514 = vmatmul.mubr.f32.gmra.mrb[0].mxu0 %v447
    %v515 = vpop.f32.mrb[0].mxu0
    %v516 = vadd.f32 0.0, %v515
    %v517 = vpop.f32.mrb[0].mxu0
    %518 = vdwg.mxu0
    %519 = vrot.lane.b32.xlu0 %v169, 96
    %v520 = vpop.permute.xlu0 %519
    %521 = vrot.lane.b32.xlu0 %v169, 32
    %v522 = vpop.permute.xlu0 %521
    %v523 = vsel %vm190, %v520, 0
    %v525 = vsel %vm190, %v522, 0
    %527 = vmatprep.subr.mxu0 0.0
    %528 = vmatpush1.xpose.msra.mxu0 %v525
    %529 = vmatprep.subr.mxu0 0.0
    %530 = vmatpush1.xpose.msra.mxu0 0.0
    %531 = vmatprep.subr.mxu0 0.0
    %532 = vmatpush1.xpose.msra.mxu0 0.0
    %533 = vmatprep.subr.mxu0 0.0
    %534 = vmatpush1.xpose.msra.mxu0 0.0
    %535 = vmatprep.subr.mxu0 0.0
    %536 = vmatpush1.xpose.msra.mxu0 0.0
    %537 = vmatprep.subr.mxu0 0.0
    %538 = vmatpush1.xpose.msra.mxu0 0.0
    %539 = vmatprep.subr.mxu0 0.0
    %540 = vmatpush1.xpose.msra.mxu0 0.0
    %541 = vmatprep.subr.mxu0 0.0
    %542 = vmatpush1.xpose.msra.mxu0 0.0
    %543 = vmatprep.subr.mxu0 0.0
    %544 = vmatpush1.xpose.msra.mxu0 0.0
    %545 = vmatprep.subr.mxu0 0.0
    %546 = vmatpush1.xpose.msra.mxu0 0.0
    %547 = vmatprep.subr.mxu0 0.0
    %548 = vmatpush1.xpose.msra.mxu0 0.0
    %549 = vmatprep.subr.mxu0 0.0
    %550 = vmatpush1.xpose.msra.mxu0 0.0
    %551 = vmatprep.subr.mxu0 0.0
    %552 = vmatpush1.xpose.msra.mxu0 0.0
    %553 = vmatprep.subr.mxu0 0.0
    %554 = vmatpush1.xpose.msra.mxu0 0.0
    %555 = vmatprep.subr.mxu0 0.0
    %556 = vmatpush1.xpose.msra.mxu0 0.0
    %557 = vmatprep.subr.mxu0 0.0
    %558 = vmatpush1.xpose.msra.mxu0 0.0
    %559 = vmatprep.subr.mxu0 0.0
    %560 = vmatpush1.xpose.msra.mxu0 0.0
    %561 = vmatprep.subr.mxu0 0.0
    %562 = vmatpush1.xpose.msra.mxu0 0.0
    %563 = vmatprep.subr.mxu0 0.0
    %564 = vmatpush1.xpose.msra.mxu0 0.0
    %565 = vmatprep.subr.mxu0 0.0
    %566 = vmatpush1.xpose.msra.mxu0 0.0
    %567 = vmatprep.subr.mxu0 0.0
    %568 = vmatpush1.xpose.msra.mxu0 0.0
    %569 = vmatprep.subr.mxu0 0.0
    %570 = vmatpush1.xpose.msra.mxu0 0.0
    %571 = vmatprep.subr.mxu0 0.0
    %572 = vmatpush1.xpose.msra.mxu0 0.0
    %573 = vmatprep.subr.mxu0 0.0
    %574 = vmatpush1.xpose.msra.mxu0 0.0
    %575 = vmatprep.subr.mxu0 0.0
    %576 = vmatpush1.xpose.msra.mxu0 0.0
    %577 = vmatprep.subr.mxu0 0.0
    %578 = vmatpush1.xpose.msra.mxu0 0.0
    %579 = vmatprep.subr.mxu0 0.0
    %580 = vmatpush1.xpose.msra.mxu0 0.0
    %581 = vmatprep.subr.mxu0 0.0
    %582 = vmatpush1.xpose.msra.mxu0 0.0
    %583 = vmatprep.subr.mxu0 0.0
    %584 = vmatpush1.xpose.msra.mxu0 0.0
    %585 = vmatprep.subr.mxu0 0.0
    %586 = vmatpush1.xpose.msra.mxu0 0.0
    %587 = vmatprep.subr.mxu0 0.0
    %588 = vmatpush1.xpose.msra.mxu0 0.0
    %589 = vmatprep.subr.mxu0 0.0
    %590 = vmatpush1.xpose.msra.mxu0 0.0
    %591 = vmatprep.mubr.f32.mxu0 0.0
    %592 = vmatmul.mubr.f32.gmra.mrb[0].mxu0 %v523
    %v593 = vpop.f32.mrb[0].mxu0
    %v594 = vadd.f32 0.0, %v593
    %v595 = vpop.f32.mrb[0].mxu0
    %596 = vdwg.mxu0
    %597 = vrot.lane.b32.xlu0 %v175, 96
    %v598 = vpop.permute.xlu0 %597
    %599 = vrot.lane.b32.xlu0 %v175, 32
    %v600 = vpop.permute.xlu0 %599
    %v601 = vsel %vm190, %v598, 0
    %v603 = vsel %vm190, %v600, 0
    %605 = vmatprep.subr.mxu0 0.0
    %606 = vmatpush1.xpose.msra.mxu0 %v603
    %607 = vmatprep.subr.mxu0 0.0
    %608 = vmatpush1.xpose.msra.mxu0 0.0
    %609 = vmatprep.subr.mxu0 0.0
    %610 = vmatpush1.xpose.msra.mxu0 0.0
    %611 = vmatprep.subr.mxu0 0.0
    %612 = vmatpush1.xpose.msra.mxu0 0.0
    %613 = vmatprep.subr.mxu0 0.0
    %614 = vmatpush1.xpose.msra.mxu0 0.0
    %615 = vmatprep.subr.mxu0 0.0
    %616 = vmatpush1.xpose.msra.mxu0 0.0
    %617 = vmatprep.subr.mxu0 0.0
    %618 = vmatpush1.xpose.msra.mxu0 0.0
    %619 = vmatprep.subr.mxu0 0.0
    %620 = vmatpush1.xpose.msra.mxu0 0.0
    %621 = vmatprep.subr.mxu0 0.0
    %622 = vmatpush1.xpose.msra.mxu0 0.0
    %623 = vmatprep.subr.mxu0 0.0
    %624 = vmatpush1.xpose.msra.mxu0 0.0
    %625 = vmatprep.subr.mxu0 0.0
    %626 = vmatpush1.xpose.msra.mxu0 0.0
    %627 = vmatprep.subr.mxu0 0.0
    %628 = vmatpush1.xpose.msra.mxu0 0.0
    %629 = vmatprep.subr.mxu0 0.0
    %630 = vmatpush1.xpose.msra.mxu0 0.0
    %631 = vmatprep.subr.mxu0 0.0
    %632 = vmatpush1.xpose.msra.mxu0 0.0
    %633 = vmatprep.subr.mxu0 0.0
    %634 = vmatpush1.xpose.msra.mxu0 0.0
    %635 = vmatprep.subr.mxu0 0.0
    %636 = vmatpush1.xpose.msra.mxu0 0.0
    %637 = vmatprep.subr.mxu0 0.0
    %638 = vmatpush1.xpose.msra.mxu0 0.0
    %639 = vmatprep.subr.mxu0 0.0
    %640 = vmatpush1.xpose.msra.mxu0 0.0
    %641 = vmatprep.subr.mxu0 0.0
    %642 = vmatpush1.xpose.msra.mxu0 0.0
    %643 = vmatprep.subr.mxu0 0.0
    %644 = vmatpush1.xpose.msra.mxu0 0.0
    %645 = vmatprep.subr.mxu0 0.0
    %646 = vmatpush1.xpose.msra.mxu0 0.0
    %647 = vmatprep.subr.mxu0 0.0
    %648 = vmatpush1.xpose.msra.mxu0 0.0
    %649 = vmatprep.subr.mxu0 0.0
    %650 = vmatpush1.xpose.msra.mxu0 0.0
    %651 = vmatprep.subr.mxu0 0.0
    %652 = vmatpush1.xpose.msra.mxu0 0.0
    %653 = vmatprep.subr.mxu0 0.0
    %654 = vmatpush1.xpose.msra.mxu0 0.0
    %655 = vmatprep.subr.mxu0 0.0
    %656 = vmatpush1.xpose.msra.mxu0 0.0
    %657 = vmatprep.subr.mxu0 0.0
    %658 = vmatpush1.xpose.msra.mxu0 0.0
    %659 = vmatprep.subr.mxu0 0.0
    %660 = vmatpush1.xpose.msra.mxu0 0.0
    %661 = vmatprep.subr.mxu0 0.0
    %662 = vmatpush1.xpose.msra.mxu0 0.0
    %663 = vmatprep.subr.mxu0 0.0
    %664 = vmatpush1.xpose.msra.mxu0 0.0
    %665 = vmatprep.subr.mxu0 0.0
    %666 = vmatpush1.xpose.msra.mxu0 0.0
    %667 = vmatprep.subr.mxu0 0.0
    %668 = vmatpush1.xpose.msra.mxu0 0.0
    %669 = vmatprep.mubr.f32.mxu0 0.0
    %670 = vmatmul.mubr.f32.gmra.mrb[0].mxu0 %v601
    %v671 = vpop.f32.mrb[0].mxu0
    %v672 = vadd.f32 0.0, %v671
    %v673 = vpop.f32.mrb[0].mxu0
    %674 = vdwg.mxu0
    %v675 = vsel %vm342, %v594, -inf
    %676 = vmax.xlane.f32.xlu0 %v675
    %v677 = vpop.xlane.xlu0 %676
    %v678 = vsel %vm342, %v672, -inf
    %679 = vmax.xlane.f32.xlu0 %v678
    %v680 = vpop.xlane.xlu0 %679
    %v681 = vsub.f32 %v594, %v677
    %v682 = vsub.f32 %v672, %v680
    %v683 = vmul.f32 %v681, 1.442695
    %v684 = vpow.pop %v683
    %v685 = vmul.f32 %v682, 1.442695
    %v686 = vpow.pop %v685
    %v687 = vsel %vm342, %v684, 0.0
    %688 = vadd.xlane.f32.xlu0 %v687
    %v689 = vpop.xlane.xlu0 %688
    %v690 = vsel %vm342, %v686, 0.0
    %691 = vadd.xlane.f32.xlu0 %v690
    %v692 = vpop.xlane.xlu0 %691
    %v693 = vrcp.pop %v689
    %v694 = vrcp.pop %v692
    %v695 = vmul.f32 %v689, %v693
    %v696 = vmul.f32 %v692, %v694
    %v697 = vsub.f32 2.0, %v695
    %v698 = vsub.f32 2.0, %v696
    %v699 = vmul.f32 %v693, %v697
    %v700 = vmul.f32 %v694, %v698
    %v701 = vmul.f32 %v684, %v699
    %v702 = vmul.f32 %v686, %v700
    %s703 = scalar_lea.vmem [#allocation9], 8
    %704 = vst.msk [vmem:[%s703] sm:$0xff] %vm342, %v701
    %705 = vst.msk [vmem:[%s703 + $0x10] sm:$0xff] %vm342, %v702
    %707 = vrot.lane.b32.xlu0 %v171, 96
    %v708 = vpop.permute.xlu0 %707
    %v711 = vsel %vm342, %v701, 0
    %713 = vmatprep.subr.mxu0 0.0
    %714 = vmatpush1.msra.mxu0 %v708
    %715 = vmatprep.subr.mxu0 0.0
    %716 = vmatpush1.msra.mxu0 0.0
    %717 = vmatprep.subr.mxu0 0.0
    %718 = vmatpush1.msra.mxu0 0.0
    %719 = vmatprep.subr.mxu0 0.0
    %720 = vmatpush1.msra.mxu0 0.0
    %721 = vmatprep.subr.mxu0 0.0
    %722 = vmatpush1.msra.mxu0 0.0
    %723 = vmatprep.subr.mxu0 0.0
    %724 = vmatpush1.msra.mxu0 0.0
    %725 = vmatprep.subr.mxu0 0.0
    %726 = vmatpush1.msra.mxu0 0.0
    %727 = vmatprep.subr.mxu0 0.0
    %728 = vmatpush1.msra.mxu0 0.0
    %729 = vmatprep.subr.mxu0 0.0
    %730 = vmatpush1.msra.mxu0 0.0
    %731 = vmatprep.subr.mxu0 0.0
    %732 = vmatpush1.msra.mxu0 0.0
    %733 = vmatprep.subr.mxu0 0.0
    %734 = vmatpush1.msra.mxu0 0.0
    %735 = vmatprep.subr.mxu0 0.0
    %736 = vmatpush1.msra.mxu0 0.0
    %737 = vmatprep.subr.mxu0 0.0
    %738 = vmatpush1.msra.mxu0 0.0
    %739 = vmatprep.subr.mxu0 0.0
    %740 = vmatpush1.msra.mxu0 0.0
    %741 = vmatprep.subr.mxu0 0.0
    %742 = vmatpush1.msra.mxu0 0.0
    %743 = vmatprep.subr.mxu0 0.0
    %744 = vmatpush1.msra.mxu0 0.0
    %745 = vmatprep.subr.mxu0 0.0
    %746 = vmatpush1.msra.mxu0 0.0
    %747 = vmatprep.subr.mxu0 0.0
    %748 = vmatpush1.msra.mxu0 0.0
    %749 = vmatprep.subr.mxu0 0.0
    %750 = vmatpush1.msra.mxu0 0.0
    %751 = vmatprep.subr.mxu0 0.0
    %752 = vmatpush1.msra.mxu0 0.0
    %753 = vmatprep.subr.mxu0 0.0
    %754 = vmatpush1.msra.mxu0 0.0
    %755 = vmatprep.subr.mxu0 0.0
    %756 = vmatpush1.msra.mxu0 0.0
    %757 = vmatprep.subr.mxu0 0.0
    %758 = vmatpush1.msra.mxu0 0.0
    %759 = vmatprep.subr.mxu0 0.0
    %760 = vmatpush1.msra.mxu0 0.0
    %761 = vmatprep.subr.mxu0 0.0
    %762 = vmatpush1.msra.mxu0 0.0
    %763 = vmatprep.subr.mxu0 0.0
    %764 = vmatpush1.msra.mxu0 0.0
    %765 = vmatprep.subr.mxu0 0.0
    %766 = vmatpush1.msra.mxu0 0.0
    %767 = vmatprep.subr.mxu0 0.0
    %768 = vmatpush1.msra.mxu0 0.0
    %769 = vmatprep.subr.mxu0 0.0
    %770 = vmatpush1.msra.mxu0 0.0
    %771 = vmatprep.subr.mxu0 0.0
    %772 = vmatpush1.msra.mxu0 0.0
    %773 = vmatprep.subr.mxu0 0.0
    %774 = vmatpush1.msra.mxu0 0.0
    %775 = vmatprep.subr.mxu0 0.0
    %776 = vmatpush1.msra.mxu0 0.0
    %777 = vmatprep.mubr.f32.mxu0 0.0
    %778 = vmatmul.mubr.f32.gmra.mrb[0].mxu0 %v711
    %v779 = vpop.f32.mrb[0].mxu0
    %v780 = vadd.f32 0.0, %v779
    %v781 = vpop.f32.mrb[0].mxu0
    %782 = vdwg.mxu0
    %784 = vrot.lane.b32.xlu0 %v177, 96
    %v785 = vpop.permute.xlu0 %784
    %v788 = vsel %vm342, %v702, 0
    %790 = vmatprep.subr.mxu0 0.0
    %791 = vmatpush1.msra.mxu0 %v785
    %792 = vmatprep.subr.mxu0 0.0
    %793 = vmatpush1.msra.mxu0 0.0
    %794 = vmatprep.subr.mxu0 0.0
    %795 = vmatpush1.msra.mxu0 0.0
    %796 = vmatprep.subr.mxu0 0.0
    %797 = vmatpush1.msra.mxu0 0.0
    %798 = vmatprep.subr.mxu0 0.0
    %799 = vmatpush1.msra.mxu0 0.0
    %800 = vmatprep.subr.mxu0 0.0
    %801 = vmatpush1.msra.mxu0 0.0
    %802 = vmatprep.subr.mxu0 0.0
    %803 = vmatpush1.msra.mxu0 0.0
    %804 = vmatprep.subr.mxu0 0.0
    %805 = vmatpush1.msra.mxu0 0.0
    %806 = vmatprep.subr.mxu0 0.0
    %807 = vmatpush1.msra.mxu0 0.0
    %808 = vmatprep.subr.mxu0 0.0
    %809 = vmatpush1.msra.mxu0 0.0
    %810 = vmatprep.subr.mxu0 0.0
    %811 = vmatpush1.msra.mxu0 0.0
    %812 = vmatprep.subr.mxu0 0.0
    %813 = vmatpush1.msra.mxu0 0.0
    %814 = vmatprep.subr.mxu0 0.0
    %815 = vmatpush1.msra.mxu0 0.0
    %816 = vmatprep.subr.mxu0 0.0
    %817 = vmatpush1.msra.mxu0 0.0
    %818 = vmatprep.subr.mxu0 0.0
    %819 = vmatpush1.msra.mxu0 0.0
    %820 = vmatprep.subr.mxu0 0.0
    %821 = vmatpush1.msra.mxu0 0.0
    %822 = vmatprep.subr.mxu0 0.0
    %823 = vmatpush1.msra.mxu0 0.0
    %824 = vmatprep.subr.mxu0 0.0
    %825 = vmatpush1.msra.mxu0 0.0
    %826 = vmatprep.subr.mxu0 0.0
    %827 = vmatpush1.msra.mxu0 0.0
    %828 = vmatprep.subr.mxu0 0.0
    %829 = vmatpush1.msra.mxu0 0.0
    %830 = vmatprep.subr.mxu0 0.0
    %831 = vmatpush1.msra.mxu0 0.0
    %832 = vmatprep.subr.mxu0 0.0
    %833 = vmatpush1.msra.mxu0 0.0
    %834 = vmatprep.subr.mxu0 0.0
    %835 = vmatpush1.msra.mxu0 0.0
    %836 = vmatprep.subr.mxu0 0.0
    %837 = vmatpush1.msra.mxu0 0.0
    %838 = vmatprep.subr.mxu0 0.0
    %839 = vmatpush1.msra.mxu0 0.0
    %840 = vmatprep.subr.mxu0 0.0
    %841 = vmatpush1.msra.mxu0 0.0
    %842 = vmatprep.subr.mxu0 0.0
    %843 = vmatpush1.msra.mxu0 0.0
    %844 = vmatprep.subr.mxu0 0.0
    %845 = vmatpush1.msra.mxu0 0.0
    %846 = vmatprep.subr.mxu0 0.0
    %847 = vmatpush1.msra.mxu0 0.0
    %848 = vmatprep.subr.mxu0 0.0
    %849 = vmatpush1.msra.mxu0 0.0
    %850 = vmatprep.subr.mxu0 0.0
    %851 = vmatpush1.msra.mxu0 0.0
    %852 = vmatprep.subr.mxu0 0.0
    %853 = vmatpush1.msra.mxu0 0.0
    %854 = vmatprep.mubr.f32.mxu0 0.0
    %855 = vmatmul.mubr.f32.gmra.mrb[0].mxu0 %v788
    %v856 = vpop.f32.mrb[0].mxu0
    %v857 = vadd.f32 0.0, %v856
    %v858 = vpop.f32.mrb[0].mxu0
    %859 = vdwg.mxu0
    %v861 = vsel %vm190, %v780, 0
    %v864 = vsel %vm190, %v857, 0
    %866 = vmatprep.subr.mxu0 0.0
    %867 = vmatpush1.msra.mxu0 %v183
    %868 = vmatprep.subr.mxu0 0.0
    %869 = vmatpush1.msra.mxu0 %v184
    %870 = vmatprep.subr.mxu0 0.0
    %871 = vmatpush1.msra.mxu0 %v185
    %872 = vmatprep.subr.mxu0 0.0
    %873 = vmatpush1.msra.mxu0 %v186
    %874 = vmatprep.subr.mxu0 0.0
    %875 = vmatpush1.msra.mxu0 0.0
    %876 = vmatprep.subr.mxu0 0.0
    %877 = vmatpush1.msra.mxu0 0.0
    %878 = vmatprep.subr.mxu0 0.0
    %879 = vmatpush1.msra.mxu0 0.0
    %880 = vmatprep.subr.mxu0 0.0
    %881 = vmatpush1.msra.mxu0 0.0
    %882 = vmatprep.subr.mxu0 0.0
    %883 = vmatpush1.msra.mxu0 0.0
    %884 = vmatprep.subr.mxu0 0.0
    %885 = vmatpush1.msra.mxu0 0.0
    %886 = vmatprep.subr.mxu0 0.0
    %887 = vmatpush1.msra.mxu0 0.0
    %888 = vmatprep.subr.mxu0 0.0
    %889 = vmatpush1.msra.mxu0 0.0
    %890 = vmatprep.subr.mxu0 0.0
    %891 = vmatpush1.msra.mxu0 0.0
    %892 = vmatprep.subr.mxu0 0.0
    %893 = vmatpush1.msra.mxu0 0.0
    %894 = vmatprep.subr.mxu0 0.0
    %895 = vmatpush1.msra.mxu0 0.0
    %896 = vmatprep.subr.mxu0 0.0
    %897 = vmatpush1.msra.mxu0 0.0
    %898 = vmatprep.subr.mxu0 0.0
    %899 = vmatpush1.msra.mxu0 0.0
    %900 = vmatprep.subr.mxu0 0.0
    %901 = vmatpush1.msra.mxu0 0.0
    %902 = vmatprep.subr.mxu0 0.0
    %903 = vmatpush1.msra.mxu0 0.0
    %904 = vmatprep.subr.mxu0 0.0
    %905 = vmatpush1.msra.mxu0 0.0
    %906 = vmatprep.subr.mxu0 0.0
    %907 = vmatpush1.msra.mxu0 0.0
    %908 = vmatprep.subr.mxu0 0.0
    %909 = vmatpush1.msra.mxu0 0.0
    %910 = vmatprep.subr.mxu0 0.0
    %911 = vmatpush1.msra.mxu0 0.0
    %912 = vmatprep.subr.mxu0 0.0
    %913 = vmatpush1.msra.mxu0 0.0
    %914 = vmatprep.subr.mxu0 0.0
    %915 = vmatpush1.msra.mxu0 0.0
    %916 = vmatprep.subr.mxu0 0.0
    %917 = vmatpush1.msra.mxu0 0.0
    %918 = vmatprep.subr.mxu0 0.0
    %919 = vmatpush1.msra.mxu0 0.0
    %920 = vmatprep.subr.mxu0 0.0
    %921 = vmatpush1.msra.mxu0 0.0
    %922 = vmatprep.subr.mxu0 0.0
    %923 = vmatpush1.msra.mxu0 0.0
    %924 = vmatprep.subr.mxu0 0.0
    %925 = vmatpush1.msra.mxu0 0.0
    %926 = vmatprep.subr.mxu0 0.0
    %927 = vmatpush1.msra.mxu0 0.0
    %928 = vmatprep.subr.mxu0 0.0
    %929 = vmatpush1.msra.mxu0 0.0
    %930 = vmatprep.mubr.f32.mxu0 0.0
    %931 = vmatmul.mubr.f32.gmra.mrb[0].mxu0 %v861
    %v932 = vpop.f32.mrb[0].mxu0
    %v933 = vadd.f32 0.0, %v932
    %v934 = vpop.f32.mrb[0].mxu0
    %935 = vmatprep.mubr.f32.mxu0 0.0
    %936 = vmatmul.mubr.f32.gmra.mrb[0].mxu0 %v864
    %v937 = vpop.f32.mrb[0].mxu0
    %v938 = vadd.f32 0.0, %v937
    %v939 = vpop.f32.mrb[0].mxu0
    %940 = vdwg.mxu0
    %v942 = vsel %vm190, %v443, 0
    %v945 = vsel %vm190, %v516, 0
    %947 = vmatprep.subr.mxu0 0.0
    %948 = vmatpush1.msra.mxu0 %v179
    %949 = vmatprep.subr.mxu0 0.0
    %950 = vmatpush1.msra.mxu0 %v180
    %951 = vmatprep.subr.mxu0 0.0
    %952 = vmatpush1.msra.mxu0 %v181
    %953 = vmatprep.subr.mxu0 0.0
    %954 = vmatpush1.msra.mxu0 %v182
    %955 = vmatprep.subr.mxu0 0.0
    %956 = vmatpush1.msra.mxu0 0.0
    %957 = vmatprep.subr.mxu0 0.0
    %958 = vmatpush1.msra.mxu0 0.0
    %959 = vmatprep.subr.mxu0 0.0
    %960 = vmatpush1.msra.mxu0 0.0
    %961 = vmatprep.subr.mxu0 0.0
    %962 = vmatpush1.msra.mxu0 0.0
    %963 = vmatprep.subr.mxu0 0.0
    %964 = vmatpush1.msra.mxu0 0.0
    %965 = vmatprep.subr.mxu0 0.0
    %966 = vmatpush1.msra.mxu0 0.0
    %967 = vmatprep.subr.mxu0 0.0
    %968 = vmatpush1.msra.mxu0 0.0
    %969 = vmatprep.subr.mxu0 0.0
    %970 = vmatpush1.msra.mxu0 0.0
    %971 = vmatprep.subr.mxu0 0.0
    %972 = vmatpush1.msra.mxu0 0.0
    %973 = vmatprep.subr.mxu0 0.0
    %974 = vmatpush1.msra.mxu0 0.0
    %975 = vmatprep.subr.mxu0 0.0
    %976 = vmatpush1.msra.mxu0 0.0
    %977 = vmatprep.subr.mxu0 0.0
    %978 = vmatpush1.msra.mxu0 0.0
    %979 = vmatprep.subr.mxu0 0.0
    %980 = vmatpush1.msra.mxu0 0.0
    %981 = vmatprep.subr.mxu0 0.0
    %982 = vmatpush1.msra.mxu0 0.0
    %983 = vmatprep.subr.mxu0 0.0
    %984 = vmatpush1.msra.mxu0 0.0
    %985 = vmatprep.subr.mxu0 0.0
    %986 = vmatpush1.msra.mxu0 0.0
    %987 = vmatprep.subr.mxu0 0.0
    %988 = vmatpush1.msra.mxu0 0.0
    %989 = vmatprep.subr.mxu0 0.0
    %990 = vmatpush1.msra.mxu0 0.0
    %991 = vmatprep.subr.mxu0 0.0
    %992 = vmatpush1.msra.mxu0 0.0
    %993 = vmatprep.subr.mxu0 0.0
    %994 = vmatpush1.msra.mxu0 0.0
    %995 = vmatprep.subr.mxu0 0.0
    %996 = vmatpush1.msra.mxu0 0.0
    %997 = vmatprep.subr.mxu0 0.0
    %998 = vmatpush1.msra.mxu0 0.0
    %999 = vmatprep.subr.mxu0 0.0
    %1000 = vmatpush1.msra.mxu0 0.0
    %1001 = vmatprep.subr.mxu0 0.0
    %1002 = vmatpush1.msra.mxu0 0.0
    %1003 = vmatprep.subr.mxu0 0.0
    %1004 = vmatpush1.msra.mxu0 0.0
    %1005 = vmatprep.subr.mxu0 0.0
    %1006 = vmatpush1.msra.mxu0 0.0
    %1007 = vmatprep.subr.mxu0 0.0
    %1008 = vmatpush1.msra.mxu0 0.0
    %1009 = vmatprep.subr.mxu0 0.0
    %1010 = vmatpush1.msra.mxu0 0.0
    %1011 = vmatprep.mubr.f32.mxu0 0.0
    %1012 = vmatmul.mubr.f32.gmra.mrb[0].mxu0 %v942
    %v1013 = vpop.f32.mrb[0].mxu0
    %v1014 = vadd.f32 %v933, %v1013
    %v1015 = vpop.f32.mrb[0].mxu0
    %1016 = vmatprep.mubr.f32.mxu0 0.0
    %1017 = vmatmul.mubr.f32.gmra.mrb[0].mxu0 %v945
    %v1018 = vpop.f32.mrb[0].mxu0
    %v1019 = vadd.f32 %v938, %v1018
    %v1020 = vpop.f32.mrb[0].mxu0
    %1021 = vdwg.mxu0
    %v1022 = vld [vmem:[%s4] sm:$0x1]
    %v1024 = vlaneseq
    %v1025 = vshrl.u32 %v1024, 7
    %v1026 = vsub.s32 0, %v1025
    %v1027 = vrot.slane %v1022, %v1026
    %v1029 = vadd.f32 %v1014, %v1027
    %v1030 = vadd.f32 %v1019, %v1027
    %1031 = vst.msk [vmem:[#allocation8] sm:$0xff] %vm95, %v1029
    %1032 = vst.msk [vmem:[#allocation8 + $0x8] sm:$0xff] %vm95, %v1030
    // Predicated region
    $region34: #{tpu_custom_call.1} parent=1 // pred_check
      _
    $region35: #{tpu_custom_call.1} parent=1 // pred_check_branch
      %1034 = sbr.rel (0) target = $region37
    $region36: #{tpu_custom_call.1} parent=1 // pred_region
      %s1036 = ssub.s32 256, 256
      %1037 = vsyncadd [#allocation4], %s1036
      %s1038 = sshll.u32 [#allocation8], 4
      %s1039 = int_to_ptr.vmem [resolvable:$true] %s1038
      %1044 = dma.vmem_to_hbm [thread:$0]  %s1039, 256, %s5, [#allocation4], 128, 128, 8
    $region37: #{tpu_custom_call.1} parent=1 // pred_fallthru
      _
    // Predicated region
    $region38: #{tpu_custom_call.1} parent=1 // pred_check
      _
    $region39: #{tpu_custom_call.1} parent=1 // pred_check_branch
      %1046 = sbr.rel (0) target = $region41
    $region40: #{tpu_custom_call.1} parent=1 // pred_region
      %s1048 = ssub.s32 512, 512
      %1049 = vsyncadd [#allocation10], %s1048
      %s1050 = sshll.u32 [#allocation9], 4
      %s1051 = int_to_ptr.vmem [resolvable:$true] %s1050
      %1056 = dma.vmem_to_hbm [thread:$0]  %s1051, 512, %s6, [#allocation10], 128, 128, 8
    $region41: #{tpu_custom_call.1} parent=1 // pred_fallthru
      _
    // Predicated region
    $region42: #{tpu_custom_call.1} parent=1 // pred_check
      _
    $region43: #{tpu_custom_call.1} parent=1 // pred_check_branch
      %1058 = sbr.rel (0) target = $region45
    $region44: #{tpu_custom_call.1} parent=1 // pred_region
      %1059 = dma.done [#allocation4], 256
    $region45: #{tpu_custom_call.1} parent=1 // pred_fallthru
      _
    // Predicated region
    $region46: #{tpu_custom_call.1} parent=1 // pred_check
      _
    $region47: #{tpu_custom_call.1} parent=1 // pred_check_branch
      %1061 = sbr.rel (0) target = $region49
    $region48: #{tpu_custom_call.1} parent=1 // pred_region
      %1062 = dma.done [#allocation10], 512
    $region49: #{tpu_custom_call.1} parent=1 // pred_fallthru
      _
    %1063 = vsyncpa [#allocation3], 1
    %1064 = vsyncpa [#allocation6], 1
    %1065 = vsyncpa [#allocation4], 1
    %1066 = vsyncpa [#allocation10], 1

</llo_original>
